<compile_context>
chip_gen: v7x
topology: tpu7x:2x2x1
jax: 0.10.0
libtpu: 0.0.40
codegen_flags: <defaults>
</compile_context>

<pallas_src>
import functools

import jax
import jax.numpy as jnp
import numpy as np
from jax import lax
from jax.experimental import pallas as pl
from jax.experimental.pallas import tpu as pltpu


def _round_up(v, m):
    return ((v + m - 1) // m) * m


def _vmem_limit_bytes():
    """Per-generation scoped-VMEM budget (feedback: no flat 48 MiB cap)."""
    try:
        cap = int(pltpu.get_tpu_info().vmem_capacity_bytes)
    except Exception:
        cap = 64 * 1024 * 1024          # conservative fallback (v7x-class physical VMEM)
    # ~80% of physical, never above 112 MiB (headroom for Mosaic internals).
    return min(int(cap * 0.8), 112 * 1024 * 1024)


def g2gcn_kernel(num_layers, sq_col, use_sq_lane,
                 x_ref, w_in_ref, w_conv_ref, b_conv_ref, w_fc_ref, b_fc_ref,
                 deg_ref, a_hbm_ref, b_hbm_ref,
                 out_ref,
                 a_vmem, b_vmem, dma_sem):
    # Kick off both adjacency HBM->VMEM DMAs immediately; input_fc and the gate
    # constants below don't need them, so their work hides part of the 2*N^2-byte copy.
    cp_a = pltpu.make_async_copy(a_hbm_ref, a_vmem, dma_sem.at[0])
    cp_b = pltpu.make_async_copy(b_hbm_ref, b_vmem, dma_sem.at[1])
    cp_a.start()
    cp_b.start()

    # input_fc (no bias): [N, Cin] @ [Cin, Hp] -> [N, Hp]; bf16 operands, f32 accumulate.
    x = jnp.dot(x_ref[...], w_in_ref[...], preferred_element_type=jnp.float32)

    deg = deg_ref[...]                              # [N, 1] f32, exact out-degree counts
    inv_deg = 1.0 / (deg + 1e-10)                   # hoisted: reused every layer

    if use_sq_lane:
        # Lane mask selecting the spare padded column that carries ||x_new||^2.
        col_ids = lax.broadcasted_iota(jnp.int32, x.shape, 1)
        sq_mask = col_ids == sq_col
    else:
        sq_mask = None

    # Adjacency tiles must be resident before the first layer's aggregation matmul.
    cp_a.wait()
    cp_b.wait()

    def layer_body(l, x):
        W = w_conv_ref[l]                           # (Hp, Hp) bf16, dynamic layer index
        b = b_conv_ref[l]                           # (1, Hp)  f32

        # GCNConv (normalize falsy): agg[col] = sum_{edges (row,col)} (x @ W)[row] + bias.
        h = jnp.dot(x.astype(jnp.bfloat16), W, preferred_element_type=jnp.float32)
        agg = jnp.dot(a_vmem[...], h.astype(jnp.bfloat16),
                      preferred_element_type=jnp.float32) + b
        x_new = jnp.maximum(agg, 0.0)               # F.relu; padded lanes stay exactly 0

        # G2 gate: tau_i = tanh( (1/deg_i) * sum_{edges (i,j)} ||x_new[i] - x_new[j]||^2 )
        sq = jnp.sum(x_new * x_new, axis=-1, keepdims=True)         # [N, 1]
        if use_sq_lane:
            # Ride sq in the spare padded lane so B@sq comes out of the same MXU pass
            # as B@x_new (no extra N^2 matmul per layer).
            x_aug = jnp.where(sq_mask, sq, x_new).astype(jnp.bfloat16)
            bx = jnp.dot(b_vmem[...], x_aug, preferred_element_type=jnp.float32)
            gate_vec = jnp.where(sq_mask, 1.0, -2.0 * x_new)
            red = jnp.sum(bx * gate_vec, axis=-1, keepdims=True)    # Bsq - 2*cross
        else:
            # H already a multiple of 128: don't widen Hp (would double v5e adjacency
            # MXU passes); pay one narrow B @ sq matmul instead.
            bx = jnp.dot(b_vmem[...], x_new.astype(jnp.bfloat16),
                         preferred_element_type=jnp.float32)
            bsq = jnp.dot(b_vmem[...], sq.astype(jnp.bfloat16),
                          preferred_element_type=jnp.float32)
            red = bsq - 2.0 * jnp.sum(bx * x_new, axis=-1, keepdims=True)

        tau_num = jnp.maximum(deg * sq + red, 0.0)  # guard catastrophic cancellation
        tau = jnp.tanh(tau_num * inv_deg)           # [N, 1]
        return (1.0 - tau) * x + tau * x_new

    # fori_loop (not an unrolled Python loop): bounds live ranges of the per-layer
    # [N, Hp] temporaries and keeps code size flat for deep models.
    x = lax.fori_loop(0, num_layers, layer_body, x)

    # Final fc (with bias); out_ref is lane-dense (Cp multiple of 128) -> unmasked stores.
    out_ref[...] = (jnp.dot(x.astype(jnp.bfloat16), w_fc_ref[...],
                            preferred_element_type=jnp.float32) + b_fc_ref[...])


def preprocess_graph(edge_index, padded_nodes):
    """Sparse edge list -> dense adjacency (both orientations) + exact out-degree.

    Hoisted out of the forward pass (perf feedback): for a static topology this runs
    once and the results are reused for every call, removing ~3*N^2*4 bytes of HBM
    traffic + a large scatter from each forward.
    """
    row, col = edge_index
    B = jnp.zeros((padded_nodes, padded_nodes), jnp.float32).at[row, col].add(1.0)
    deg = jnp.sum(B, axis=1, keepdims=True)         # [Np, 1] f32, exact integer counts
    A = B.T                                         # A[col, row]: aggregation orientation
    # Edge multiplicities <= 256 are exact in bf16.
    return A.astype(jnp.bfloat16), B.astype(jnp.bfloat16), deg


def g2gcn_forward(x, graph, params, num_layers):
    """Pallas-backed forward. x: [N, Cin] f32; graph = preprocess_graph(edge_index, Np)."""
    W_in, W_conv, b_conv, W_fc, b_fc = params
    A, B, deg = graph
    N, Cin = x.shape
    Np = A.shape[0]
    H = W_in.shape[1]
    Cout = W_fc.shape[1]

    Cinp = _round_up(Cin, 128)           # lane-dense input features
    Hp = _round_up(H, 128)
    use_sq_lane = H < Hp                 # a free padded lane exists to carry ||x_new||^2
    sq_col = H if use_sq_lane else -1
    Cp = _round_up(Cout, 128)            # lane-dense output

    # Zero-pad features / weights; weights stored bf16 for native MXU operands.
    xp = jnp.zeros((Np, Cinp), jnp.bfloat16).at[:N, :Cin].set(x.astype(jnp.bfloat16))
    W_in_p = jnp.zeros((Cinp, Hp), jnp.bfloat16).at[:Cin, :H].set(W_in.astype(jnp.bfloat16))
    W_conv_p = jnp.zeros((num_layers, Hp, Hp), jnp.bfloat16).at[:, :H, :H].set(
        W_conv.astype(jnp.bfloat16))
    b_conv_p = jnp.zeros((num_layers, 1, Hp), jnp.float32).at[:, :, :H].set(b_conv)
    W_fc_p = jnp.zeros((Hp, Cp), jnp.bfloat16).at[:H, :Cout].set(W_fc.astype(jnp.bfloat16))
    b_fc_p = jnp.zeros((1, Cp), jnp.float32).at[:, :Cout].set(b_fc)

    vmem_limit = _vmem_limit_bytes()
    approx_bytes = (2 * Np * Np * 2                  # A + B VMEM scratch (bf16)
                    + num_layers * Hp * Hp * 2       # conv weight stack (bf16)
                    + 10 * Np * Hp * 4               # per-layer activations / temporaries
                    + Np * Cp * 4 + Np * Cinp * 2)   # output + input
    if approx_bytes > vmem_limit:
        # TODO(synk): per-layer node-tiled streaming variant (blocked adjacency with
        # scalar-prefetch gather) for graphs whose dense adjacency exceeds VMEM.
        raise ValueError(
            f"graph too large for fully-resident kernel: ~{approx_bytes >> 20} MiB needed, "
            f"{vmem_limit >> 20} MiB scoped VMEM available")

    vmem = pl.BlockSpec(memory_space=pltpu.MemorySpace.VMEM)
    anyspace = pl.BlockSpec(memory_space=pl.ANY)

    out_p = pl.pallas_call(
        functools.partial(g2gcn_kernel, num_layers, sq_col, use_sq_lane),
        out_shape=jax.ShapeDtypeStruct((Np, Cp), jnp.float32),
        in_specs=[vmem] * 7 + [anyspace, anyspace],
        out_specs=vmem,
        scratch_shapes=[
            pltpu.VMEM((Np, Np), jnp.bfloat16),      # A (aggregation orientation)
            pltpu.VMEM((Np, Np), jnp.bfloat16),      # B (gate orientation)
            pltpu.SemaphoreType.DMA((2,)),
        ],
        compiler_params=pltpu.CompilerParams(vmem_limit_bytes=vmem_limit),
    )(xp, W_in_p, W_conv_p, b_conv_p, W_fc_p, b_fc_p, deg, A, B)

    return out_p[:N, :Cout]


def reference_forward(x, edge_index, params, num_layers):
    """Pure-JAX f32 scatter-based reference mirroring the PyTorch code."""
    W_in, W_conv, b_conv, W_fc, b_fc = params
    row, col = edge_index
    N = x.shape[0]
    x = x @ W_in
    for l in range(num_layers):
        h = x @ W_conv[l]
        agg = jnp.zeros_like(h).at[col].add(h[row]) + b_conv[l, 0]
        x_new = jax.nn.relu(agg)
        diffs = jnp.sum(jnp.abs(x_new[row] - x_new[col]) ** 2, axis=-1)
        tau_vals = jnp.zeros((N,), jnp.float32).at[row].add(diffs)
        deg = jnp.zeros((N,), jnp.float32).at[row].add(1.0) + 1e-10
        tau = jnp.tanh(tau_vals / deg)[:, None]
        x = (1.0 - tau) * x + tau * x_new
    return x @ W_fc + b_fc[0]


if __name__ == "__main__":
    N, C_IN, HIDDEN, C_OUT, NUM_LAYERS, E = 32, 16, 32, 8, 2, 96

    key = jax.random.PRNGKey(0)
    k_x, k_e, k_win, k_wc, k_bc, k_wfc, k_bfc = jax.random.split(key, 7)

    x = jax.random.normal(k_x, (N, C_IN), jnp.float32)
    edge_index = jax.random.randint(k_e, (2, E), 0, N, dtype=jnp.int32)

    # Deterministic synthetic parameters (shapes follow the module's __init__).
    W_in = jax.random.normal(k_win, (C_IN, HIDDEN), jnp.float32) * (0.1 / np.sqrt(C_IN))
    W_conv = jax.random.normal(k_wc, (NUM_LAYERS, HIDDEN, HIDDEN), jnp.float32) * (0.1 / np.sqrt(HIDDEN))
    b_conv = jax.random.normal(k_bc, (NUM_LAYERS, 1, HIDDEN), jnp.float32) * 0.01
    W_fc = jax.random.normal(k_wfc, (HIDDEN, C_OUT), jnp.float32) * (1.0 / np.sqrt(HIDDEN))
    b_fc = jax.random.normal(k_bfc, (1, C_OUT), jnp.float32) * 0.01
    params = (W_in, W_conv, b_conv, W_fc, b_fc)

    # Graph preprocessing is hoisted out of the forward pass and cached per topology.
    Np = _round_up(N, 128)
    graph = preprocess_graph(edge_index, Np)
    graph = jax.tree_util.tree_map(jax.block_until_ready, graph)

    out = g2gcn_forward(x, graph, params, NUM_LAYERS)
    out = jax.block_until_ready(out)

    ref = jax.block_until_ready(reference_forward(x, edge_index, params, NUM_LAYERS))
    # bf16 MXU operands (f32 accumulation) per perf feedback -> relaxed tolerances vs f32 ref.
    np.testing.assert_allclose(np.asarray(out), np.asarray(ref), rtol=2e-2, atol=2e-2)

    print("KERNEL_OK")
</pallas_src>

<mosaic_0001>
module attributes {stable_mosaic.version = 11 : i64} {
  func.func @g2gcn_kernel(%arg0: memref<128x128xbf16, #tpu.memory_space<vmem>>, %arg1: memref<128x128xbf16, #tpu.memory_space<vmem>>, %arg2: memref<2x128x128xbf16, #tpu.memory_space<vmem>>, %arg3: memref<2x1x128xf32, #tpu.memory_space<vmem>>, %arg4: memref<128x128xbf16, #tpu.memory_space<vmem>>, %arg5: memref<1x128xf32, #tpu.memory_space<vmem>>, %arg6: memref<128x1xf32, #tpu.memory_space<vmem>>, %arg7: memref<128x128xbf16, #tpu.memory_space<any>>, %arg8: memref<128x128xbf16, #tpu.memory_space<any>>, %arg9: memref<128x128xf32, #tpu.memory_space<vmem>>, %arg10: memref<128x128xbf16, #tpu.memory_space<vmem>>, %arg11: memref<128x128xbf16, #tpu.memory_space<vmem>>, %arg12: memref<2x!tpu.dma_semaphore, #tpu.memory_space<semaphore_mem>>) attributes {dimension_semantics = [], scalar_prefetch = 0 : i64, scratch_operands = 3 : i64, tpu.core_type = #tpu.core_type<tc>} {
    %c0_i32 = arith.constant 0 : i32
    %0 = tpu.memref_slice %arg12[%c0_i32] : memref<2x!tpu.dma_semaphore, #tpu.memory_space<semaphore_mem>> -> memref<1x!tpu.dma_semaphore, #tpu.memory_space<semaphore_mem>>
    %1 = tpu.memref_squeeze %0 : memref<1x!tpu.dma_semaphore, #tpu.memory_space<semaphore_mem>> -> memref<!tpu.dma_semaphore, #tpu.memory_space<semaphore_mem>>
    tpu.enqueue_dma source(%arg7 : memref<128x128xbf16, #tpu.memory_space<any>>) target(%arg10 : memref<128x128xbf16, #tpu.memory_space<vmem>>) target_semaphore(%1 : memref<!tpu.dma_semaphore, #tpu.memory_space<semaphore_mem>>)
    %c1_i32 = arith.constant 1 : i32
    %2 = tpu.memref_slice %arg12[%c1_i32] : memref<2x!tpu.dma_semaphore, #tpu.memory_space<semaphore_mem>> -> memref<1x!tpu.dma_semaphore, #tpu.memory_space<semaphore_mem>>
    %3 = tpu.memref_squeeze %2 : memref<1x!tpu.dma_semaphore, #tpu.memory_space<semaphore_mem>> -> memref<!tpu.dma_semaphore, #tpu.memory_space<semaphore_mem>>
    tpu.enqueue_dma source(%arg8 : memref<128x128xbf16, #tpu.memory_space<any>>) target(%arg11 : memref<128x128xbf16, #tpu.memory_space<vmem>>) target_semaphore(%3 : memref<!tpu.dma_semaphore, #tpu.memory_space<semaphore_mem>>)
    %c0 = arith.constant 0 : index
    %c0_0 = arith.constant 0 : index
    %4 = vector.load %arg0[%c0, %c0_0] : memref<128x128xbf16, #tpu.memory_space<vmem>>, vector<128x128xbf16>
    %c0_1 = arith.constant 0 : index
    %c0_2 = arith.constant 0 : index
    %5 = vector.load %arg1[%c0_1, %c0_2] : memref<128x128xbf16, #tpu.memory_space<vmem>>, vector<128x128xbf16>
    %cst = arith.constant dense<0.000000e+00> : vector<128x128xf32>
    %6 = tpu.matmul %4, %5, %cst {dimension_numbers = #tpu.dot_dimension_numbers<[1], [0], [0], [1], [0, 0, 1, 1], [], []>} : vector<128x128xbf16>, vector<128x128xbf16>, vector<128x128xf32> -> vector<128x128xf32>
    %c0_3 = arith.constant 0 : index
    %c0_4 = arith.constant 0 : index
    %7 = vector.load %arg6[%c0_3, %c0_4] : memref<128x1xf32, #tpu.memory_space<vmem>>, vector<128x1xf32>
    %cst_5 = arith.constant 1.000000e-10 : f32
    %8 = vector.broadcast %cst_5 : f32 to vector<128x1xf32>
    %9 = arith.addf %7, %8 : vector<128x1xf32>
    %cst_6 = arith.constant 1.000000e+00 : f32
    %10 = vector.broadcast %cst_6 : f32 to vector<128x1xf32>
    %11 = arith.divf %10, %9 : vector<128x1xf32>
    %12 = tpu.iota {dimensions = array<i32: 1>} : vector<128x128xi32>
    %c32_i32 = arith.constant 32 : i32
    %13 = vector.broadcast %c32_i32 : i32 to vector<128x128xi32>
    %14 = arith.cmpi eq, %12, %13 : vector<128x128xi32>
    %c0_i32_7 = arith.constant 0 : i32
    %15 = tpu.memref_slice %arg12[%c0_i32_7] : memref<2x!tpu.dma_semaphore, #tpu.memory_space<semaphore_mem>> -> memref<1x!tpu.dma_semaphore, #tpu.memory_space<semaphore_mem>>
    %16 = tpu.memref_squeeze %15 : memref<1x!tpu.dma_semaphore, #tpu.memory_space<semaphore_mem>> -> memref<!tpu.dma_semaphore, #tpu.memory_space<semaphore_mem>>
    tpu.wait_dma2 semaphore(%16 : memref<!tpu.dma_semaphore, #tpu.memory_space<semaphore_mem>>) src(%arg7 : memref<128x128xbf16, #tpu.memory_space<any>>) dst(%arg10 : memref<128x128xbf16, #tpu.memory_space<vmem>>)
    %c1_i32_8 = arith.constant 1 : i32
    %17 = tpu.memref_slice %arg12[%c1_i32_8] : memref<2x!tpu.dma_semaphore, #tpu.memory_space<semaphore_mem>> -> memref<1x!tpu.dma_semaphore, #tpu.memory_space<semaphore_mem>>
    %18 = tpu.memref_squeeze %17 : memref<1x!tpu.dma_semaphore, #tpu.memory_space<semaphore_mem>> -> memref<!tpu.dma_semaphore, #tpu.memory_space<semaphore_mem>>
    tpu.wait_dma2 semaphore(%18 : memref<!tpu.dma_semaphore, #tpu.memory_space<semaphore_mem>>) src(%arg8 : memref<128x128xbf16, #tpu.memory_space<any>>) dst(%arg11 : memref<128x128xbf16, #tpu.memory_space<vmem>>)
    %c0_i32_9 = arith.constant 0 : i32
    %c2_i32 = arith.constant 2 : i32
    %19 = arith.addi %c0_i32_9, %c2_i32 : i32
    %c1_i32_10 = arith.constant 1 : i32
    %20 = scf.for %arg13 = %c0_i32_9 to %19 step %c1_i32_10 iter_args(%arg14 = %6) -> (vector<128x128xf32>)  : i32 {
      %28 = arith.index_cast %arg13 : i32 to index
      %c0_19 = arith.constant 0 : index
      %c0_20 = arith.constant 0 : index
      %29 = vector.load %arg2[%28, %c0_19, %c0_20] : memref<2x128x128xbf16, #tpu.memory_space<vmem>>, vector<1x128x128xbf16>
      %30 = vector.shape_cast %29 : vector<1x128x128xbf16> to vector<128x128xbf16>
      %31 = arith.index_cast %arg13 : i32 to index
      %c0_21 = arith.constant 0 : index
      %c0_22 = arith.constant 0 : index
      %32 = vector.load %arg3[%31, %c0_21, %c0_22] : memref<2x1x128xf32, #tpu.memory_space<vmem>>, vector<1x1x128xf32>
      %33 = vector.shape_cast %32 : vector<1x1x128xf32> to vector<1x128xf32>
      %34 = arith.truncf %arg14 : vector<128x128xf32> to vector<128x128xbf16>
      %cst_23 = arith.constant dense<0.000000e+00> : vector<128x128xf32>
      %35 = tpu.matmul %34, %30, %cst_23 {dimension_numbers = #tpu.dot_dimension_numbers<[1], [0], [0], [1], [0, 0, 1, 1], [], []>} : vector<128x128xbf16>, vector<128x128xbf16>, vector<128x128xf32> -> vector<128x128xf32>
      %c0_24 = arith.constant 0 : index
      %c0_25 = arith.constant 0 : index
      %36 = vector.load %arg10[%c0_24, %c0_25] : memref<128x128xbf16, #tpu.memory_space<vmem>>, vector<128x128xbf16>
      %37 = arith.truncf %35 : vector<128x128xf32> to vector<128x128xbf16>
      %cst_26 = arith.constant dense<0.000000e+00> : vector<128x128xf32>
      %38 = tpu.matmul %36, %37, %cst_26 {dimension_numbers = #tpu.dot_dimension_numbers<[1], [0], [0], [1], [0, 0, 1, 1], [], []>} : vector<128x128xbf16>, vector<128x128xbf16>, vector<128x128xf32> -> vector<128x128xf32>
      %39 = vector.broadcast %33 : vector<1x128xf32> to vector<128x128xf32>
      %40 = arith.addf %38, %39 : vector<128x128xf32>
      %cst_27 = arith.constant 0.000000e+00 : f32
      %41 = vector.broadcast %cst_27 : f32 to vector<128x128xf32>
      %42 = arith.maximumf %40, %41 : vector<128x128xf32>
      %43 = arith.mulf %42, %42 : vector<128x128xf32>
      %cst_28 = arith.constant dense<0.000000e+00> : vector<128xf32>
      %44 = vector.multi_reduction <add>, %43, %cst_28 [1] : vector<128x128xf32> to vector<128xf32>
      %45 = vector.shape_cast %44 : vector<128xf32> to vector<128x1xf32>
      %46 = vector.shape_cast %45 : vector<128x1xf32> to vector<128x1xf32>
      %47 = vector.broadcast %46 : vector<128x1xf32> to vector<128x128xf32>
      %48 = arith.select %14, %47, %42 : vector<128x128xi1>, vector<128x128xf32>
      %49 = arith.truncf %48 : vector<128x128xf32> to vector<128x128xbf16>
      %c0_29 = arith.constant 0 : index
      %c0_30 = arith.constant 0 : index
      %50 = vector.load %arg11[%c0_29, %c0_30] : memref<128x128xbf16, #tpu.memory_space<vmem>>, vector<128x128xbf16>
      %cst_31 = arith.constant dense<0.000000e+00> : vector<128x128xf32>
      %51 = tpu.matmul %50, %49, %cst_31 {dimension_numbers = #tpu.dot_dimension_numbers<[1], [0], [0], [1], [0, 0, 1, 1], [], []>} : vector<128x128xbf16>, vector<128x128xbf16>, vector<128x128xf32> -> vector<128x128xf32>
      %cst_32 = arith.constant -2.000000e+00 : f32
      %52 = vector.broadcast %cst_32 : f32 to vector<128x128xf32>
      %53 = arith.mulf %52, %42 : vector<128x128xf32>
      %cst_33 = arith.constant 1.000000e+00 : f32
      %54 = vector.broadcast %cst_33 : f32 to vector<128x128xf32>
      %55 = arith.select %14, %54, %53 : vector<128x128xi1>, vector<128x128xf32>
      %56 = arith.mulf %51, %55 : vector<128x128xf32>
      %cst_34 = arith.constant dense<0.000000e+00> : vector<128xf32>
      %57 = vector.multi_reduction <add>, %56, %cst_34 [1] : vector<128x128xf32> to vector<128xf32>
      %58 = vector.shape_cast %57 : vector<128xf32> to vector<128x1xf32>
      %59 = arith.mulf %7, %45 : vector<128x1xf32>
      %60 = arith.addf %59, %58 : vector<128x1xf32>
      %cst_35 = arith.constant 0.000000e+00 : f32
      %61 = vector.broadcast %cst_35 : f32 to vector<128x1xf32>
      %62 = arith.maximumf %60, %61 : vector<128x1xf32>
      %63 = arith.mulf %62, %11 : vector<128x1xf32>
      %64 = math.tanh %63 : vector<128x1xf32>
      %cst_36 = arith.constant 1.000000e+00 : f32
      %65 = vector.broadcast %cst_36 : f32 to vector<128x1xf32>
      %66 = arith.subf %65, %64 : vector<128x1xf32>
      %67 = vector.broadcast %66 : vector<128x1xf32> to vector<128x128xf32>
      %68 = arith.mulf %67, %arg14 : vector<128x128xf32>
      %69 = vector.broadcast %64 : vector<128x1xf32> to vector<128x128xf32>
      %70 = arith.mulf %69, %42 : vector<128x128xf32>
      %71 = arith.addf %68, %70 : vector<128x128xf32>
      scf.yield %71 : vector<128x128xf32>
    }
    %c2_i32_11 = arith.constant 2 : i32
    %21 = arith.truncf %20 : vector<128x128xf32> to vector<128x128xbf16>
    %c0_12 = arith.constant 0 : index
    %c0_13 = arith.constant 0 : index
    %22 = vector.load %arg4[%c0_12, %c0_13] : memref<128x128xbf16, #tpu.memory_space<vmem>>, vector<128x128xbf16>
    %cst_14 = arith.constant dense<0.000000e+00> : vector<128x128xf32>
    %23 = tpu.matmul %21, %22, %cst_14 {dimension_numbers = #tpu.dot_dimension_numbers<[1], [0], [0], [1], [0, 0, 1, 1], [], []>} : vector<128x128xbf16>, vector<128x128xbf16>, vector<128x128xf32> -> vector<128x128xf32>
    %c0_15 = arith.constant 0 : index
    %c0_16 = arith.constant 0 : index
    %24 = vector.load %arg5[%c0_15, %c0_16] : memref<1x128xf32, #tpu.memory_space<vmem>>, vector<1x128xf32>
    %25 = vector.broadcast %24 : vector<1x128xf32> to vector<128x128xf32>
    %26 = arith.addf %23, %25 : vector<128x128xf32>
    %c0_17 = arith.constant 0 : index
    %c0_18 = arith.constant 0 : index
    %27 = vector.load %arg9[%c0_17, %c0_18] : memref<128x128xf32, #tpu.memory_space<vmem>>, vector<128x128xf32>
    tpu.vector_store %arg9[%c0_17, %c0_18], %26 {strides = array<i32>} : memref<128x128xf32, #tpu.memory_space<vmem>>, vector<128x128xf32>,
    return
  }
}

</mosaic_0001>

<llo_original>
// kernel: tpu_custom_call.1
$region0: #{tpu_custom_call.1}
  #allocation0 [shape = 'u32[]', space=smem, size = 0x4, offset = 0x4, fixed_abs, tag = 'smem constant byte address 0x4 - core index']
  #allocation1 [shape = 'u32[144,128]{1,0:T(1,128)}', space=vmem, size = 0x12000, scoped, tag = 'internal scratch']
  #allocation2 [shape = 'bf16[128,128]{1,0:T(16,128)(2,1)}', space=vmem, size = 0x8000, scoped, tag = 'scratch operand']
  #allocation3 [shape = 'bf16[128,128]{1,0:T(16,128)(2,1)}', space=vmem, size = 0x8000, scoped, tag = 'scratch operand']
  #allocation4 [shape = 's32[2]{0}', space=sflag, size = 0x8, scoped, tag = 'scratch operand']
  #allocation12 [shape = 's32[]', space=sflag, size = 0x4, offset = 0, fixed_abs, tag = 'sflag constant byte address 0x0 - dummy sync flag']
  #allocation13 [shape = 's32[]', space=sflag, size = 0x4, offset = 0, fixed_abs, tag = 'sflag constant byte address 0x0 - dummy sync flag']
  #allocation14 [shape = 'u32[]', space=smem, size = 0x4, offset = 0x44, fixed_abs, tag = 'smem constant byte address 0x44 - assertion arg 0']
  #allocation15 [shape = 'u32[]', space=smem, size = 0x4, offset = 0x48, fixed_abs, tag = 'smem constant byte address 0x48 - assertion arg 1']
  #allocation16 [shape = 's32[]', space=sflag, size = 0x4, offset = 0, fixed_abs, tag = 'sflag constant byte address 0x0 - dummy sync flag']
  #allocation17 [shape = 's32[]', space=sflag, size = 0x4, offset = 0, fixed_abs, tag = 'sflag constant byte address 0x0 - dummy sync flag']
  %s0 = inlined_call_operand.hbm [shape: bf16[128,128], index: 0, kind: input, shape index: {}]
  %s1 = inlined_call_operand.hbm [shape: bf16[128,128], index: 1, kind: input, shape index: {}]
  %s2 = inlined_call_operand.vmem [shape: bf16[2,128,128], index: 2, kind: input, shape index: {}]
  %s3 = inlined_call_operand.vmem [shape: f32[2,1,128], index: 3, kind: input, shape index: {}]
  %s4 = inlined_call_operand.hbm [shape: bf16[128,128], index: 4, kind: input, shape index: {}]
  %s5 = inlined_call_operand.vmem [shape: f32[1,128], index: 5, kind: input, shape index: {}]
  %s6 = inlined_call_operand.vmem [shape: f32[128,1], index: 6, kind: input, shape index: {}]
  %s7 = inlined_call_operand.hbm [shape: bf16[128,128], index: 7, kind: input, shape index: {}]
  %s8 = inlined_call_operand.hbm [shape: bf16[128,128], index: 8, kind: input, shape index: {}]
  %s9 = inlined_call_operand.hbm [shape: f32[128,128], index: 9, kind: output, shape index: {}]
  %s10 = sld [smem:[#allocation0]]
  $region65: #{tpu_custom_call.1} parent=0
    _
  %s12 = ssub.s32 1, %s10
  %s13 = scalar_select 0, %s12, %s10
  $region1: #{tpu_custom_call.1} parent=0
    #allocation5 [shape = 'u8[32768]{0}', space=vmem, size = 0x8000, scoped, tag = 'input window, operand 0, single buffered']
    #allocation6 [shape = 's32[1]{0}', space=sflag, size = 0x4, scoped, tag = 'scoped memory for tpu_custom_call.1']
    #allocation7 [shape = 's32[1]{0}', space=sflag, size = 0x4, scoped, tag = 'scoped memory for tpu_custom_call.1']
    #allocation8 [shape = 'u8[32768]{0}', space=vmem, size = 0x8000, scoped, tag = 'input window, operand 1, single buffered']
    #allocation9 [shape = 's32[1]{0}', space=sflag, size = 0x4, scoped, tag = 'scoped memory for tpu_custom_call.1']
    #allocation10 [shape = 'u8[32768]{0}', space=vmem, size = 0x8000, scoped, tag = 'input window, operand 4, single buffered']
    #allocation11 [shape = 'u8[65536]{0}', space=vmem, size = 0x10000, scoped, tag = 'output window, operand 0, single buffered']
    %14 = vsyncpa [#allocation6], 0
    %15 = vsyncpa [#allocation9], 0
    %16 = vsyncpa [#allocation7], 0
    // Predicated region
    $region2: #{tpu_custom_call.1} parent=1 // pred_check
      _
    $region3: #{tpu_custom_call.1} parent=1 // pred_check_branch
      %18 = sbr.rel (0) target = $region5
    $region4: #{tpu_custom_call.1} parent=1 // pred_region
      %s20 = ssub.s32 1024, 1024
      %21 = vsyncadd [#allocation6], %s20
      %s22 = sshll.u32 [#allocation5], 4
      %s23 = int_to_ptr.vmem [resolvable:$true] %s22
      %28 = dma.hbm_to_vmem [thread:$0]  %s0, 1024, %s23, [#allocation6], 64, 64, 4
    $region5: #{tpu_custom_call.1} parent=1 // pred_fallthru
      _
    // Predicated region
    $region6: #{tpu_custom_call.1} parent=1 // pred_check
      _
    $region7: #{tpu_custom_call.1} parent=1 // pred_check_branch
      %30 = sbr.rel (0) target = $region9
    $region8: #{tpu_custom_call.1} parent=1 // pred_region
      %s32 = ssub.s32 1024, 1024
      %33 = vsyncadd [#allocation9], %s32
      %s34 = sshll.u32 [#allocation8], 4
      %s35 = int_to_ptr.vmem [resolvable:$true] %s34
      %40 = dma.hbm_to_vmem [thread:$0]  %s1, 1024, %s35, [#allocation9], 64, 64, 4
    $region9: #{tpu_custom_call.1} parent=1 // pred_fallthru
      _
    // Predicated region
    $region10: #{tpu_custom_call.1} parent=1 // pred_check
      _
    $region11: #{tpu_custom_call.1} parent=1 // pred_check_branch
      %42 = sbr.rel (0) target = $region13
    $region12: #{tpu_custom_call.1} parent=1 // pred_region
      _
    $region13: #{tpu_custom_call.1} parent=1 // pred_fallthru
      _
    // Predicated region
    $region14: #{tpu_custom_call.1} parent=1 // pred_check
      _
    $region15: #{tpu_custom_call.1} parent=1 // pred_check_branch
      %44 = sbr.rel (0) target = $region17
    $region16: #{tpu_custom_call.1} parent=1 // pred_region
      _
    $region17: #{tpu_custom_call.1} parent=1 // pred_fallthru
      _
    // Predicated region
    $region18: #{tpu_custom_call.1} parent=1 // pred_check
      _
    $region19: #{tpu_custom_call.1} parent=1 // pred_check_branch
      %46 = sbr.rel (0) target = $region21
    $region20: #{tpu_custom_call.1} parent=1 // pred_region
      %s48 = ssub.s32 1024, 1024
      %49 = vsyncadd [#allocation9], %s48
      %s50 = sshll.u32 [#allocation10], 4
      %s51 = int_to_ptr.vmem [resolvable:$true] %s50
      %56 = dma.hbm_to_vmem [thread:$0]  %s4, 1024, %s51, [#allocation9], 64, 64, 4
    $region21: #{tpu_custom_call.1} parent=1 // pred_fallthru
      _
    // Predicated region
    $region22: #{tpu_custom_call.1} parent=1 // pred_check
      _
    $region23: #{tpu_custom_call.1} parent=1 // pred_check_branch
      %58 = sbr.rel (0) target = $region25
    $region24: #{tpu_custom_call.1} parent=1 // pred_region
      _
    $region25: #{tpu_custom_call.1} parent=1 // pred_fallthru
      _
    // Predicated region
    $region26: #{tpu_custom_call.1} parent=1 // pred_check
      _
    $region27: #{tpu_custom_call.1} parent=1 // pred_check_branch
      %60 = sbr.rel (0) target = $region29
    $region28: #{tpu_custom_call.1} parent=1 // pred_region
      _
    $region29: #{tpu_custom_call.1} parent=1 // pred_fallthru
      _
    // Predicated region
    $region30: #{tpu_custom_call.1} parent=1 // pred_check
      _
    $region31: #{tpu_custom_call.1} parent=1 // pred_check_branch
      %62 = sbr.rel (0) target = $region33
    $region32: #{tpu_custom_call.1} parent=1 // pred_region
      %63 = dma.done [#allocation6], 1024
    $region33: #{tpu_custom_call.1} parent=1 // pred_fallthru
      _
    // Predicated region
    $region34: #{tpu_custom_call.1} parent=1 // pred_check
      _
    $region35: #{tpu_custom_call.1} parent=1 // pred_check_branch
      %65 = sbr.rel (0) target = $region37
    $region36: #{tpu_custom_call.1} parent=1 // pred_region
      %66 = dma.done [#allocation9], 1024
    $region37: #{tpu_custom_call.1} parent=1 // pred_fallthru
      _
    // Predicated region
    $region38: #{tpu_custom_call.1} parent=1 // pred_check
      _
    $region39: #{tpu_custom_call.1} parent=1 // pred_check_branch
      %68 = sbr.rel (0) target = $region41
    $region40: #{tpu_custom_call.1} parent=1 // pred_region
      %69 = dma.done [#allocation9], 1024
    $region41: #{tpu_custom_call.1} parent=1 // pred_fallthru
      _
    // Predicated region
    $region42: #{tpu_custom_call.1} parent=1 // pred_check
      _
    $region43: #{tpu_custom_call.1} parent=1 // pred_check_branch
      %72 = sbr.rel target = $region45
    $region44: #{tpu_custom_call.1} parent=1 // pred_region
      %73 = sst [smem:[#allocation14]] [#allocation13]
      %74 = sst [smem:[#allocation15]] [#allocation12]
    $region45: #{tpu_custom_call.1} parent=1 // pred_fallthru
      _
    %76 = shalt.err (0)
    %s78 = sshll.u32 [#allocation2], 4
    %s79 = int_to_ptr.vmem [resolvable:$true] %s78
    %81 = dma.hbm_to_vmem [thread:$0]  %s7, 1024, %s79, [#allocation4]
    %s82 = scalar_lea.sflag [#allocation4], 1
    // Predicated region
    $region46: #{tpu_custom_call.1} parent=1 // pred_check
      _
    $region47: #{tpu_custom_call.1} parent=1 // pred_check_branch
      %84 = sbr.rel target = $region49
    $region48: #{tpu_custom_call.1} parent=1 // pred_region
      %85 = sst [smem:[#allocation14]] [#allocation17]
      %86 = sst [smem:[#allocation15]] [#allocation16]
    $region49: #{tpu_custom_call.1} parent=1 // pred_fallthru
      _
    %88 = shalt.err (0)
    %s90 = sshll.u32 [#allocation3], 4
    %s91 = int_to_ptr.vmem [resolvable:$true] %s90
    %93 = dma.hbm_to_vmem [thread:$0]  %s8, 1024, %s91, %s82
    %v94 = vld [vmem:[#allocation5] sm:$0xf]
    %v95 = vld [vmem:[#allocation5 + $0x4] sm:$0xf]
    %v96 = vld [vmem:[#allocation5 + $0x8] sm:$0xf]
    %v97 = vld [vmem:[#allocation5 + $0xc] sm:$0xf]
    %v98 = vld [vmem:[#allocation5 + $0x10] sm:$0xf]
    %v99 = vld [vmem:[#allocation5 + $0x14] sm:$0xf]
    %v100 = vld [vmem:[#allocation5 + $0x18] sm:$0xf]
    %v101 = vld [vmem:[#allocation5 + $0x1c] sm:$0xf]
    %v102 = vld [vmem:[#allocation5 + $0x20] sm:$0xf]
    %v103 = vld [vmem:[#allocation5 + $0x24] sm:$0xf]
    %v104 = vld [vmem:[#allocation5 + $0x28] sm:$0xf]
    %v105 = vld [vmem:[#allocation5 + $0x2c] sm:$0xf]
    %v106 = vld [vmem:[#allocation5 + $0x30] sm:$0xf]
    %v107 = vld [vmem:[#allocation5 + $0x34] sm:$0xf]
    %v108 = vld [vmem:[#allocation5 + $0x38] sm:$0xf]
    %v109 = vld [vmem:[#allocation5 + $0x3c] sm:$0xf]
    %v110 = vld [vmem:[#allocation8] sm:$0xf]
    %v111 = vld [vmem:[#allocation8 + $0x4] sm:$0xf]
    %v112 = vld [vmem:[#allocation8 + $0x8] sm:$0xf]
    %v113 = vld [vmem:[#allocation8 + $0xc] sm:$0xf]
    %v114 = vld [vmem:[#allocation8 + $0x10] sm:$0xf]
    %v115 = vld [vmem:[#allocation8 + $0x14] sm:$0xf]
    %v116 = vld [vmem:[#allocation8 + $0x18] sm:$0xf]
    %v117 = vld [vmem:[#allocation8 + $0x1c] sm:$0xf]
    %v118 = vld [vmem:[#allocation8 + $0x20] sm:$0xf]
    %v119 = vld [vmem:[#allocation8 + $0x24] sm:$0xf]
    %v120 = vld [vmem:[#allocation8 + $0x28] sm:$0xf]
    %v121 = vld [vmem:[#allocation8 + $0x2c] sm:$0xf]
    %v122 = vld [vmem:[#allocation8 + $0x30] sm:$0xf]
    %v123 = vld [vmem:[#allocation8 + $0x34] sm:$0xf]
    %v124 = vld [vmem:[#allocation8 + $0x38] sm:$0xf]
    %v125 = vld [vmem:[#allocation8 + $0x3c] sm:$0xf]
    %v142 = vunpack.c.l.b16 %v94
    %v143 = vunpack.c.l.b16 %v95
    %v144 = vunpack.c.l.b16 %v96
    %v145 = vunpack.c.l.b16 %v97
    %v146 = vunpack.c.l.b16 %v98
    %v147 = vunpack.c.l.b16 %v99
    %v148 = vunpack.c.l.b16 %v100
    %v149 = vunpack.c.l.b16 %v101
    %v150 = vunpack.c.l.b16 %v102
    %v151 = vunpack.c.l.b16 %v103
    %v152 = vunpack.c.l.b16 %v104
    %v153 = vunpack.c.l.b16 %v105
    %v154 = vunpack.c.l.b16 %v106
    %v155 = vunpack.c.l.b16 %v107
    %v156 = vunpack.c.l.b16 %v108
    %v157 = vunpack.c.l.b16 %v109
    %v158 = vpack.c.b16 %v143, %v142
    %v159 = vpack.c.b16 %v145, %v144
    %v160 = vpack.c.b16 %v147, %v146
    %v161 = vpack.c.b16 %v149, %v148
    %v162 = vpack.c.b16 %v151, %v150
    %v163 = vpack.c.b16 %v153, %v152
    %v164 = vpack.c.b16 %v155, %v154
    %v165 = vpack.c.b16 %v157, %v156
    %v190 = vunpack.c.l.b16 %v110
    %v191 = vunpack.c.l.b16 %v111
    %v192 = vunpack.c.l.b16 %v112
    %v193 = vunpack.c.l.b16 %v113
    %v194 = vunpack.c.l.b16 %v114
    %v195 = vunpack.c.l.b16 %v115
    %v196 = vunpack.c.l.b16 %v116
    %v197 = vunpack.c.l.b16 %v117
    %v198 = vunpack.c.l.b16 %v118
    %v199 = vunpack.c.l.b16 %v119
    %v200 = vunpack.c.l.b16 %v120
    %v201 = vunpack.c.l.b16 %v121
    %v202 = vunpack.c.l.b16 %v122
    %v203 = vunpack.c.l.b16 %v123
    %v204 = vunpack.c.l.b16 %v124
    %v205 = vunpack.c.l.b16 %v125
    %v206 = vpack.c.b16 %v191, %v190
    %v207 = vpack.c.b16 %v193, %v192
    %v208 = vpack.c.b16 %v195, %v194
    %v209 = vpack.c.b16 %v197, %v196
    %v210 = vpack.c.b16 %v199, %v198
    %v211 = vpack.c.b16 %v201, %v200
    %v212 = vpack.c.b16 %v203, %v202
    %v213 = vpack.c.b16 %v205, %v204
    %222 = vmatprep.subr.bf16.mxu0 0
    %223 = vmatpush1.bf16.msra.mxu0 %v206
    %224 = vmatprep.subr.bf16.mxu0 0
    %225 = vmatpush1.bf16.msra.mxu0 %v207
    %226 = vmatprep.subr.bf16.mxu0 0
    %227 = vmatpush1.bf16.msra.mxu0 %v208
    %228 = vmatprep.subr.bf16.mxu0 0
    %229 = vmatpush1.bf16.msra.mxu0 %v209
    %230 = vmatprep.subr.bf16.mxu0 0
    %231 = vmatpush1.bf16.msra.mxu0 %v210
    %232 = vmatprep.subr.bf16.mxu0 0
    %233 = vmatpush1.bf16.msra.mxu0 %v211
    %234 = vmatprep.subr.bf16.mxu0 0
    %235 = vmatpush1.bf16.msra.mxu0 %v212
    %236 = vmatprep.subr.bf16.mxu0 0
    %237 = vmatpush1.bf16.msra.mxu0 %v213
    %238 = vmatprep.subr.bf16.mxu0 0
    %239 = vmatpush1.bf16.msra.mxu0 0
    %240 = vmatprep.subr.bf16.mxu0 0
    %241 = vmatpush1.bf16.msra.mxu0 0
    %242 = vmatprep.subr.bf16.mxu0 0
    %243 = vmatpush1.bf16.msra.mxu0 0
    %244 = vmatprep.subr.bf16.mxu0 0
    %245 = vmatpush1.bf16.msra.mxu0 0
    %246 = vmatprep.subr.bf16.mxu0 0
    %247 = vmatpush1.bf16.msra.mxu0 0
    %248 = vmatprep.subr.bf16.mxu0 0
    %249 = vmatpush1.bf16.msra.mxu0 0
    %250 = vmatprep.subr.bf16.mxu0 0
    %251 = vmatpush1.bf16.msra.mxu0 0
    %252 = vmatprep.subr.bf16.mxu0 0
    %253 = vmatpush1.bf16.msra.mxu0 0
    %254 = vmatprep.mubr.bf16.mxu0 0
    %255 = vmatmul.mubr.bf16.gmra.mrb[0].mxu0 %v158
    %v256 = vpop.f32.mrb[0].mxu0
    %v257 = vadd.f32 0.0, %v256
    %v258 = vpop.f32.mrb[0].mxu0
    %v259 = vpop.f32.mrb[0].mxu0
    %v260 = vadd.f32 0.0, %v259
    %v261 = vpop.f32.mrb[0].mxu0
    %262 = vmatprep.mubr.bf16.mxu0 0
    %263 = vmatmul.mubr.bf16.gmra.mrb[0].mxu0 %v159
    %v264 = vpop.f32.mrb[0].mxu0
    %v265 = vadd.f32 0.0, %v264
    %v266 = vpop.f32.mrb[0].mxu0
    %v267 = vpop.f32.mrb[0].mxu0
    %v268 = vadd.f32 0.0, %v267
    %v269 = vpop.f32.mrb[0].mxu0
    %270 = vmatprep.mubr.bf16.mxu0 0
    %271 = vmatmul.mubr.bf16.gmra.mrb[0].mxu0 %v160
    %v272 = vpop.f32.mrb[0].mxu0
    %v273 = vadd.f32 0.0, %v272
    %v274 = vpop.f32.mrb[0].mxu0
    %v275 = vpop.f32.mrb[0].mxu0
    %v276 = vadd.f32 0.0, %v275
    %v277 = vpop.f32.mrb[0].mxu0
    %278 = vmatprep.mubr.bf16.mxu0 0
    %279 = vmatmul.mubr.bf16.gmra.mrb[0].mxu0 %v161
    %v280 = vpop.f32.mrb[0].mxu0
    %v281 = vadd.f32 0.0, %v280
    %v282 = vpop.f32.mrb[0].mxu0
    %v283 = vpop.f32.mrb[0].mxu0
    %v284 = vadd.f32 0.0, %v283
    %v285 = vpop.f32.mrb[0].mxu0
    %286 = vmatprep.mubr.bf16.mxu0 0
    %287 = vmatmul.mubr.bf16.gmra.mrb[0].mxu0 %v162
    %v288 = vpop.f32.mrb[0].mxu0
    %v289 = vadd.f32 0.0, %v288
    %v290 = vpop.f32.mrb[0].mxu0
    %v291 = vpop.f32.mrb[0].mxu0
    %v292 = vadd.f32 0.0, %v291
    %v293 = vpop.f32.mrb[0].mxu0
    %294 = vmatprep.mubr.bf16.mxu0 0
    %295 = vmatmul.mubr.bf16.gmra.mrb[0].mxu0 %v163
    %v296 = vpop.f32.mrb[0].mxu0
    %v297 = vadd.f32 0.0, %v296
    %v298 = vpop.f32.mrb[0].mxu0
    %v299 = vpop.f32.mrb[0].mxu0
    %v300 = vadd.f32 0.0, %v299
    %v301 = vpop.f32.mrb[0].mxu0
    %302 = vmatprep.mubr.bf16.mxu0 0
    %303 = vmatmul.mubr.bf16.gmra.mrb[0].mxu0 %v164
    %v304 = vpop.f32.mrb[0].mxu0
    %v305 = vadd.f32 0.0, %v304
    %v306 = vpop.f32.mrb[0].mxu0
    %v307 = vpop.f32.mrb[0].mxu0
    %v308 = vadd.f32 0.0, %v307
    %v309 = vpop.f32.mrb[0].mxu0
    %310 = vmatprep.mubr.bf16.mxu0 0
    %311 = vmatmul.mubr.bf16.gmra.mrb[0].mxu0 %v165
    %v312 = vpop.f32.mrb[0].mxu0
    %v313 = vadd.f32 0.0, %v312
    %v314 = vpop.f32.mrb[0].mxu0
    %v315 = vpop.f32.mrb[0].mxu0
    %v316 = vadd.f32 0.0, %v315
    %v317 = vpop.f32.mrb[0].mxu0
    %318 = vdwg.mxu0
    %v319 = vld [vmem:[%s6] sm:$0xff]
    %v320 = vld [vmem:[%s6 + $0x8] sm:$0xff]
    %v321 = vld [vmem:[%s6 + $0x10] sm:$0xff]
    %v322 = vld [vmem:[%s6 + $0x18] sm:$0xff]
    %v323 = vld [vmem:[%s6 + $0x20] sm:$0xff]
    %v324 = vld [vmem:[%s6 + $0x28] sm:$0xff]
    %v325 = vld [vmem:[%s6 + $0x30] sm:$0xff]
    %v326 = vld [vmem:[%s6 + $0x38] sm:$0xff]
    %v327 = vld [vmem:[%s6 + $0x40] sm:$0xff]
    %v328 = vld [vmem:[%s6 + $0x48] sm:$0xff]
    %v329 = vld [vmem:[%s6 + $0x50] sm:$0xff]
    %v330 = vld [vmem:[%s6 + $0x58] sm:$0xff]
    %v331 = vld [vmem:[%s6 + $0x60] sm:$0xff]
    %v332 = vld [vmem:[%s6 + $0x68] sm:$0xff]
    %v333 = vld [vmem:[%s6 + $0x70] sm:$0xff]
    %v334 = vld [vmem:[%s6 + $0x78] sm:$0xff]
    %v335 = vadd.f32 %v319, 1e-10
    %v336 = vadd.f32 %v320, 1e-10
    %v337 = vadd.f32 %v321, 1e-10
    %v338 = vadd.f32 %v322, 1e-10
    %v339 = vadd.f32 %v323, 1e-10
    %v340 = vadd.f32 %v324, 1e-10
    %v341 = vadd.f32 %v325, 1e-10
    %v342 = vadd.f32 %v326, 1e-10
    %v343 = vadd.f32 %v327, 1e-10
    %v344 = vadd.f32 %v328, 1e-10
    %v345 = vadd.f32 %v329, 1e-10
    %v346 = vadd.f32 %v330, 1e-10
    %v347 = vadd.f32 %v331, 1e-10
    %v348 = vadd.f32 %v332, 1e-10
    %v349 = vadd.f32 %v333, 1e-10
    %v350 = vadd.f32 %v334, 1e-10
    %v351 = vrcp.pop %v335
    %v352 = vmul.f32 1.0, %v351
    %v353 = vrcp.pop %v336
    %v354 = vmul.f32 1.0, %v353
    %v355 = vrcp.pop %v337
    %v356 = vmul.f32 1.0, %v355
    %v357 = vrcp.pop %v338
    %v358 = vmul.f32 1.0, %v357
    %v359 = vrcp.pop %v339
    %v360 = vmul.f32 1.0, %v359
    %v361 = vrcp.pop %v340
    %v362 = vmul.f32 1.0, %v361
    %v363 = vrcp.pop %v341
    %v364 = vmul.f32 1.0, %v363
    %v365 = vrcp.pop %v342
    %v366 = vmul.f32 1.0, %v365
    %v367 = vrcp.pop %v343
    %v368 = vmul.f32 1.0, %v367
    %v369 = vrcp.pop %v344
    %v370 = vmul.f32 1.0, %v369
    %v371 = vrcp.pop %v345
    %v372 = vmul.f32 1.0, %v371
    %v373 = vrcp.pop %v346
    %v374 = vmul.f32 1.0, %v373
    %v375 = vrcp.pop %v347
    %v376 = vmul.f32 1.0, %v375
    %v377 = vrcp.pop %v348
    %v378 = vmul.f32 1.0, %v377
    %v379 = vrcp.pop %v349
    %v380 = vmul.f32 1.0, %v379
    %v381 = vrcp.pop %v350
    %v382 = vmul.f32 1.0, %v381
    %v383 = vlaneseq
    %v384 = vand.u32 %v383, 127
    %vm385 = vcmp.eq.s32.totalorder %v384, 32
    %s386 = smul.u32 4, 16
    %s387 = smul.u32 %s386, 1
    %s388 = sshll.u32 %s387, 4
    %389 = dma.done [#allocation4], %s388
    %s390 = sshll.u32 %s387, 4
    %391 = dma.done %s82, %s390
    loop: start=0, step=1, limit=2
    $region50: #{tpu_custom_call.1} parent=1 // loop_pre_header
      _
    $region51: #{tpu_custom_call.1} parent=1 // loop_header
      %s393 = sphi 0, %s397
      %p394 = scmp.ge.s32.totalorder %s393, 2
      %v398 = vphi %v257, %v1268
      %v399 = vphi %v260, %v1269
      %v400 = vphi %v265, %v1270
      %v401 = vphi %v268, %v1271
      %v402 = vphi %v273, %v1272
      %v403 = vphi %v276, %v1273
      %v404 = vphi %v281, %v1274
      %v405 = vphi %v284, %v1275
      %v406 = vphi %v289, %v1276
      %v407 = vphi %v292, %v1277
      %v408 = vphi %v297, %v1278
      %v409 = vphi %v300, %v1279
      %v410 = vphi %v305, %v1280
      %v411 = vphi %v308, %v1281
      %v412 = vphi %v313, %v1282
      %v413 = vphi %v316, %v1283
    $region52: #{tpu_custom_call.1} parent=1 // loop_header_branch
      %396 = sbr.rel (%p394) target = $region56
    $region53: #{tpu_custom_call.1} parent=1 // loop_body
      %s414 = smul.u32 %s393, 16
      %s415 = smul.addr %s414, 4
      %s416 = scalar_lea.vmem %s2, %s415
      %v417 = vld [vmem:[%s416] sm:$0xf]
      %v418 = vld [vmem:[%s416 + $0x4] sm:$0xf]
      %v419 = vld [vmem:[%s416 + $0x8] sm:$0xf]
      %v420 = vld [vmem:[%s416 + $0xc] sm:$0xf]
      %v421 = vld [vmem:[%s416 + $0x10] sm:$0xf]
      %v422 = vld [vmem:[%s416 + $0x14] sm:$0xf]
      %v423 = vld [vmem:[%s416 + $0x18] sm:$0xf]
      %v424 = vld [vmem:[%s416 + $0x1c] sm:$0xf]
      %v425 = vld [vmem:[%s416 + $0x20] sm:$0xf]
      %v426 = vld [vmem:[%s416 + $0x24] sm:$0xf]
      %v427 = vld [vmem:[%s416 + $0x28] sm:$0xf]
      %v428 = vld [vmem:[%s416 + $0x2c] sm:$0xf]
      %v429 = vld [vmem:[%s416 + $0x30] sm:$0xf]
      %v430 = vld [vmem:[%s416 + $0x34] sm:$0xf]
      %v431 = vld [vmem:[%s416 + $0x38] sm:$0xf]
      %v432 = vld [vmem:[%s416 + $0x3c] sm:$0xf]
      %s433 = scalar_lea.vmem %s3, %s393
      %v434 = vld [vmem:[%s433] sm:$0x1]
      %v435 = vpack.c.bf16 %v399, %v398
      %v436 = vpack.c.bf16 %v401, %v400
      %v437 = vpack.c.bf16 %v403, %v402
      %v438 = vpack.c.bf16 %v405, %v404
      %v439 = vpack.c.bf16 %v407, %v406
      %v440 = vpack.c.bf16 %v409, %v408
      %v441 = vpack.c.bf16 %v411, %v410
      %v442 = vpack.c.bf16 %v413, %v412
      %v459 = vunpack.c.l.b16 %v417
      %v460 = vunpack.c.l.b16 %v418
      %v461 = vunpack.c.l.b16 %v419
      %v462 = vunpack.c.l.b16 %v420
      %v463 = vunpack.c.l.b16 %v421
      %v464 = vunpack.c.l.b16 %v422
      %v465 = vunpack.c.l.b16 %v423
      %v466 = vunpack.c.l.b16 %v424
      %v467 = vunpack.c.l.b16 %v425
      %v468 = vunpack.c.l.b16 %v426
      %v469 = vunpack.c.l.b16 %v427
      %v470 = vunpack.c.l.b16 %v428
      %v471 = vunpack.c.l.b16 %v429
      %v472 = vunpack.c.l.b16 %v430
      %v473 = vunpack.c.l.b16 %v431
      %v474 = vunpack.c.l.b16 %v432
      %v475 = vpack.c.b16 %v460, %v459
      %v476 = vpack.c.b16 %v462, %v461
      %v477 = vpack.c.b16 %v464, %v463
      %v478 = vpack.c.b16 %v466, %v465
      %v479 = vpack.c.b16 %v468, %v467
      %v480 = vpack.c.b16 %v470, %v469
      %v481 = vpack.c.b16 %v472, %v471
      %v482 = vpack.c.b16 %v474, %v473
      %491 = vmatprep.subr.bf16.mxu0 0
      %492 = vmatpush1.bf16.msra.mxu0 %v475
      %493 = vmatprep.subr.bf16.mxu0 0
      %494 = vmatpush1.bf16.msra.mxu0 %v476
      %495 = vmatprep.subr.bf16.mxu0 0
      %496 = vmatpush1.bf16.msra.mxu0 %v477
      %497 = vmatprep.subr.bf16.mxu0 0
      %498 = vmatpush1.bf16.msra.mxu0 %v478
      %499 = vmatprep.subr.bf16.mxu0 0
      %500 = vmatpush1.bf16.msra.mxu0 %v479
      %501 = vmatprep.subr.bf16.mxu0 0
      %502 = vmatpush1.bf16.msra.mxu0 %v480
      %503 = vmatprep.subr.bf16.mxu0 0
      %504 = vmatpush1.bf16.msra.mxu0 %v481
      %505 = vmatprep.subr.bf16.mxu0 0
      %506 = vmatpush1.bf16.msra.mxu0 %v482
      %507 = vmatprep.subr.bf16.mxu0 0
      %508 = vmatpush1.bf16.msra.mxu0 0
      %509 = vmatprep.subr.bf16.mxu0 0
      %510 = vmatpush1.bf16.msra.mxu0 0
      %511 = vmatprep.subr.bf16.mxu0 0
      %512 = vmatpush1.bf16.msra.mxu0 0
      %513 = vmatprep.subr.bf16.mxu0 0
      %514 = vmatpush1.bf16.msra.mxu0 0
      %515 = vmatprep.subr.bf16.mxu0 0
      %516 = vmatpush1.bf16.msra.mxu0 0
      %517 = vmatprep.subr.bf16.mxu0 0
      %518 = vmatpush1.bf16.msra.mxu0 0
      %519 = vmatprep.subr.bf16.mxu0 0
      %520 = vmatpush1.bf16.msra.mxu0 0
      %521 = vmatprep.subr.bf16.mxu0 0
      %522 = vmatpush1.bf16.msra.mxu0 0
      %523 = vmatprep.mubr.bf16.mxu0 0
      %524 = vmatmul.mubr.bf16.gmra.mrb[0].mxu0 %v435
      %v525 = vpop.f32.mrb[0].mxu0
      %v526 = vadd.f32 0.0, %v525
      %v527 = vpop.f32.mrb[0].mxu0
      %v528 = vpop.f32.mrb[0].mxu0
      %v529 = vadd.f32 0.0, %v528
      %v530 = vpop.f32.mrb[0].mxu0
      %531 = vmatprep.mubr.bf16.mxu0 0
      %532 = vmatmul.mubr.bf16.gmra.mrb[0].mxu0 %v436
      %v533 = vpop.f32.mrb[0].mxu0
      %v534 = vadd.f32 0.0, %v533
      %v535 = vpop.f32.mrb[0].mxu0
      %v536 = vpop.f32.mrb[0].mxu0
      %v537 = vadd.f32 0.0, %v536
      %v538 = vpop.f32.mrb[0].mxu0
      %539 = vmatprep.mubr.bf16.mxu0 0
      %540 = vmatmul.mubr.bf16.gmra.mrb[0].mxu0 %v437
      %v541 = vpop.f32.mrb[0].mxu0
      %v542 = vadd.f32 0.0, %v541
      %v543 = vpop.f32.mrb[0].mxu0
      %v544 = vpop.f32.mrb[0].mxu0
      %v545 = vadd.f32 0.0, %v544
      %v546 = vpop.f32.mrb[0].mxu0
      %547 = vmatprep.mubr.bf16.mxu0 0
      %548 = vmatmul.mubr.bf16.gmra.mrb[0].mxu0 %v438
      %v549 = vpop.f32.mrb[0].mxu0
      %v550 = vadd.f32 0.0, %v549
      %v551 = vpop.f32.mrb[0].mxu0
      %v552 = vpop.f32.mrb[0].mxu0
      %v553 = vadd.f32 0.0, %v552
      %v554 = vpop.f32.mrb[0].mxu0
      %555 = vmatprep.mubr.bf16.mxu0 0
      %556 = vmatmul.mubr.bf16.gmra.mrb[0].mxu0 %v439
      %v557 = vpop.f32.mrb[0].mxu0
      %v558 = vadd.f32 0.0, %v557
      %v559 = vpop.f32.mrb[0].mxu0
      %v560 = vpop.f32.mrb[0].mxu0
      %v561 = vadd.f32 0.0, %v560
      %v562 = vpop.f32.mrb[0].mxu0
      %563 = vmatprep.mubr.bf16.mxu0 0
      %564 = vmatmul.mubr.bf16.gmra.mrb[0].mxu0 %v440
      %v565 = vpop.f32.mrb[0].mxu0
      %v566 = vadd.f32 0.0, %v565
      %v567 = vpop.f32.mrb[0].mxu0
      %v568 = vpop.f32.mrb[0].mxu0
      %v569 = vadd.f32 0.0, %v568
      %v570 = vpop.f32.mrb[0].mxu0
      %571 = vmatprep.mubr.bf16.mxu0 0
      %572 = vmatmul.mubr.bf16.gmra.mrb[0].mxu0 %v441
      %v573 = vpop.f32.mrb[0].mxu0
      %v574 = vadd.f32 0.0, %v573
      %v575 = vpop.f32.mrb[0].mxu0
      %v576 = vpop.f32.mrb[0].mxu0
      %v577 = vadd.f32 0.0, %v576
      %v578 = vpop.f32.mrb[0].mxu0
      %579 = vmatprep.mubr.bf16.mxu0 0
      %580 = vmatmul.mubr.bf16.gmra.mrb[0].mxu0 %v442
      %v581 = vpop.f32.mrb[0].mxu0
      %v582 = vadd.f32 0.0, %v581
      %v583 = vpop.f32.mrb[0].mxu0
      %v584 = vpop.f32.mrb[0].mxu0
      %v585 = vadd.f32 0.0, %v584
      %v586 = vpop.f32.mrb[0].mxu0
      %587 = vdwg.mxu0
      %v588 = vld [vmem:[#allocation2] sm:$0xff]
      %v589 = vld [vmem:[#allocation2 + $0x8] sm:$0xff]
      %v590 = vld [vmem:[#allocation2 + $0x10] sm:$0xff]
      %v591 = vld [vmem:[#allocation2 + $0x18] sm:$0xff]
      %v592 = vld [vmem:[#allocation2 + $0x20] sm:$0xff]
      %v593 = vld [vmem:[#allocation2 + $0x28] sm:$0xff]
      %v594 = vld [vmem:[#allocation2 + $0x30] sm:$0xff]
      %v595 = vld [vmem:[#allocation2 + $0x38] sm:$0xff]
      %v596 = vpack.c.bf16 %v529, %v526
      %v597 = vpack.c.bf16 %v537, %v534
      %v598 = vpack.c.bf16 %v545, %v542
      %v599 = vpack.c.bf16 %v553, %v550
      %v600 = vpack.c.bf16 %v561, %v558
      %v601 = vpack.c.bf16 %v569, %v566
      %v602 = vpack.c.bf16 %v577, %v574
      %v603 = vpack.c.bf16 %v585, %v582
      %v605 = vlaneseq
      %v606 = vshrl.u32 %v605, 7
      %v607 = vsub.s32 0, %v606
      %v608 = vrot.slane %v434, %v607
      %610 = vmatprep.subr.bf16.mxu0 0
      %611 = vmatpush1.bf16.msra.mxu0 %v596
      %612 = vmatprep.subr.bf16.mxu0 0
      %613 = vmatpush1.bf16.msra.mxu0 %v597
      %614 = vmatprep.subr.bf16.mxu0 0
      %615 = vmatpush1.bf16.msra.mxu0 %v598
      %616 = vmatprep.subr.bf16.mxu0 0
      %617 = vmatpush1.bf16.msra.mxu0 %v599
      %618 = vmatprep.subr.bf16.mxu0 0
      %619 = vmatpush1.bf16.msra.mxu0 %v600
      %620 = vmatprep.subr.bf16.mxu0 0
      %621 = vmatpush1.bf16.msra.mxu0 %v601
      %622 = vmatprep.subr.bf16.mxu0 0
      %623 = vmatpush1.bf16.msra.mxu0 %v602
      %624 = vmatprep.subr.bf16.mxu0 0
      %625 = vmatpush1.bf16.msra.mxu0 %v603
      %626 = vmatprep.subr.bf16.mxu0 0
      %627 = vmatpush1.bf16.msra.mxu0 0
      %628 = vmatprep.subr.bf16.mxu0 0
      %629 = vmatpush1.bf16.msra.mxu0 0
      %630 = vmatprep.subr.bf16.mxu0 0
      %631 = vmatpush1.bf16.msra.mxu0 0
      %632 = vmatprep.subr.bf16.mxu0 0
      %633 = vmatpush1.bf16.msra.mxu0 0
      %634 = vmatprep.subr.bf16.mxu0 0
      %635 = vmatpush1.bf16.msra.mxu0 0
      %636 = vmatprep.subr.bf16.mxu0 0
      %637 = vmatpush1.bf16.msra.mxu0 0
      %638 = vmatprep.subr.bf16.mxu0 0
      %639 = vmatpush1.bf16.msra.mxu0 0
      %640 = vmatprep.subr.bf16.mxu0 0
      %641 = vmatpush1.bf16.msra.mxu0 0
      %642 = vmatprep.mubr.bf16.mxu0 0
      %643 = vmatmul.mubr.bf16.gmra.mrb[0].mxu0 %v588
      %v644 = vpop.f32.mrb[0].mxu0
      %v645 = vadd.f32 %v608, %v644
      %v646 = vpop.f32.mrb[0].mxu0
      %v647 = vpop.f32.mrb[0].mxu0
      %v648 = vadd.f32 %v608, %v647
      %v649 = vpop.f32.mrb[0].mxu0
      %650 = vmatprep.mubr.bf16.mxu0 0
      %651 = vmatmul.mubr.bf16.gmra.mrb[0].mxu0 %v589
      %v652 = vpop.f32.mrb[0].mxu0
      %v653 = vadd.f32 %v608, %v652
      %v654 = vpop.f32.mrb[0].mxu0
      %v655 = vpop.f32.mrb[0].mxu0
      %v656 = vadd.f32 %v608, %v655
      %v657 = vpop.f32.mrb[0].mxu0
      %658 = vmatprep.mubr.bf16.mxu0 0
      %659 = vmatmul.mubr.bf16.gmra.mrb[0].mxu0 %v590
      %v660 = vpop.f32.mrb[0].mxu0
      %v661 = vadd.f32 %v608, %v660
      %v662 = vpop.f32.mrb[0].mxu0
      %v663 = vpop.f32.mrb[0].mxu0
      %v664 = vadd.f32 %v608, %v663
      %v665 = vpop.f32.mrb[0].mxu0
      %666 = vmatprep.mubr.bf16.mxu0 0
      %667 = vmatmul.mubr.bf16.gmra.mrb[0].mxu0 %v591
      %v668 = vpop.f32.mrb[0].mxu0
      %v669 = vadd.f32 %v608, %v668
      %v670 = vpop.f32.mrb[0].mxu0
      %v671 = vpop.f32.mrb[0].mxu0
      %v672 = vadd.f32 %v608, %v671
      %v673 = vpop.f32.mrb[0].mxu0
      %674 = vmatprep.mubr.bf16.mxu0 0
      %675 = vmatmul.mubr.bf16.gmra.mrb[0].mxu0 %v592
      %v676 = vpop.f32.mrb[0].mxu0
      %v677 = vadd.f32 %v608, %v676
      %v678 = vpop.f32.mrb[0].mxu0
      %v679 = vpop.f32.mrb[0].mxu0
      %v680 = vadd.f32 %v608, %v679
      %v681 = vpop.f32.mrb[0].mxu0
      %682 = vmatprep.mubr.bf16.mxu0 0
      %683 = vmatmul.mubr.bf16.gmra.mrb[0].mxu0 %v593
      %v684 = vpop.f32.mrb[0].mxu0
      %v685 = vadd.f32 %v608, %v684
      %v686 = vpop.f32.mrb[0].mxu0
      %v687 = vpop.f32.mrb[0].mxu0
      %v688 = vadd.f32 %v608, %v687
      %v689 = vpop.f32.mrb[0].mxu0
      %690 = vmatprep.mubr.bf16.mxu0 0
      %691 = vmatmul.mubr.bf16.gmra.mrb[0].mxu0 %v594
      %v692 = vpop.f32.mrb[0].mxu0
      %v693 = vadd.f32 %v608, %v692
      %v694 = vpop.f32.mrb[0].mxu0
      %v695 = vpop.f32.mrb[0].mxu0
      %v696 = vadd.f32 %v608, %v695
      %v697 = vpop.f32.mrb[0].mxu0
      %698 = vmatprep.mubr.bf16.mxu0 0
      %699 = vmatmul.mubr.bf16.gmra.mrb[0].mxu0 %v595
      %v700 = vpop.f32.mrb[0].mxu0
      %v701 = vadd.f32 %v608, %v700
      %v702 = vpop.f32.mrb[0].mxu0
      %v703 = vpop.f32.mrb[0].mxu0
      %v704 = vadd.f32 %v608, %v703
      %v705 = vpop.f32.mrb[0].mxu0
      %706 = vdwg.mxu0
      %v707 = vmax.f32 %v645, 0.0
      %v708 = vmax.f32 %v648, 0.0
      %v709 = vmax.f32 %v653, 0.0
      %v710 = vmax.f32 %v656, 0.0
      %v711 = vmax.f32 %v661, 0.0
      %v712 = vmax.f32 %v664, 0.0
      %v713 = vmax.f32 %v669, 0.0
      %v714 = vmax.f32 %v672, 0.0
      %v715 = vmax.f32 %v677, 0.0
      %v716 = vmax.f32 %v680, 0.0
      %v717 = vmax.f32 %v685, 0.0
      %v718 = vmax.f32 %v688, 0.0
      %v719 = vmax.f32 %v693, 0.0
      %v720 = vmax.f32 %v696, 0.0
      %v721 = vmax.f32 %v701, 0.0
      %v722 = vmax.f32 %v704, 0.0
      %v723 = vmul.f32 %v707, %v707
      %v724 = vmul.f32 %v708, %v708
      %v725 = vmul.f32 %v709, %v709
      %v726 = vmul.f32 %v710, %v710
      %v727 = vmul.f32 %v711, %v711
      %v728 = vmul.f32 %v712, %v712
      %v729 = vmul.f32 %v713, %v713
      %v730 = vmul.f32 %v714, %v714
      %v731 = vmul.f32 %v715, %v715
      %v732 = vmul.f32 %v716, %v716
      %v733 = vmul.f32 %v717, %v717
      %v734 = vmul.f32 %v718, %v718
      %v735 = vmul.f32 %v719, %v719
      %v736 = vmul.f32 %v720, %v720
      %v737 = vmul.f32 %v721, %v721
      %v738 = vmul.f32 %v722, %v722
      %739 = vadd.xlane.f32.xlu0 %v723
      %v740 = vpop.xlane.xlu0 %739
      %741 = vadd.xlane.f32.xlu0 %v724
      %v742 = vpop.xlane.xlu0 %741
      %743 = vadd.xlane.f32.xlu0 %v725
      %v744 = vpop.xlane.xlu0 %743
      %745 = vadd.xlane.f32.xlu0 %v726
      %v746 = vpop.xlane.xlu0 %745
      %747 = vadd.xlane.f32.xlu0 %v727
      %v748 = vpop.xlane.xlu0 %747
      %749 = vadd.xlane.f32.xlu0 %v728
      %v750 = vpop.xlane.xlu0 %749
      %751 = vadd.xlane.f32.xlu0 %v729
      %v752 = vpop.xlane.xlu0 %751
      %753 = vadd.xlane.f32.xlu0 %v730
      %v754 = vpop.xlane.xlu0 %753
      %755 = vadd.xlane.f32.xlu0 %v731
      %v756 = vpop.xlane.xlu0 %755
      %757 = vadd.xlane.f32.xlu0 %v732
      %v758 = vpop.xlane.xlu0 %757
      %759 = vadd.xlane.f32.xlu0 %v733
      %v760 = vpop.xlane.xlu0 %759
      %761 = vadd.xlane.f32.xlu0 %v734
      %v762 = vpop.xlane.xlu0 %761
      %763 = vadd.xlane.f32.xlu0 %v735
      %v764 = vpop.xlane.xlu0 %763
      %765 = vadd.xlane.f32.xlu0 %v736
      %v766 = vpop.xlane.xlu0 %765
      %767 = vadd.xlane.f32.xlu0 %v737
      %v768 = vpop.xlane.xlu0 %767
      %769 = vadd.xlane.f32.xlu0 %v738
      %v770 = vpop.xlane.xlu0 %769
      %v771 = vsel %vm385, %v740, %v707
      %v772 = vsel %vm385, %v742, %v708
      %v773 = vsel %vm385, %v744, %v709
      %v774 = vsel %vm385, %v746, %v710
      %v775 = vsel %vm385, %v748, %v711
      %v776 = vsel %vm385, %v750, %v712
      %v777 = vsel %vm385, %v752, %v713
      %v778 = vsel %vm385, %v754, %v714
      %v779 = vsel %vm385, %v756, %v715
      %v780 = vsel %vm385, %v758, %v716
      %v781 = vsel %vm385, %v760, %v717
      %v782 = vsel %vm385, %v762, %v718
      %v783 = vsel %vm385, %v764, %v719
      %v784 = vsel %vm385, %v766, %v720
      %v785 = vsel %vm385, %v768, %v721
      %v786 = vsel %vm385, %v770, %v722
      %v787 = vpack.c.bf16 %v772, %v771
      %v788 = vpack.c.bf16 %v774, %v773
      %v789 = vpack.c.bf16 %v776, %v775
      %v790 = vpack.c.bf16 %v778, %v777
      %v791 = vpack.c.bf16 %v780, %v779
      %v792 = vpack.c.bf16 %v782, %v781
      %v793 = vpack.c.bf16 %v784, %v783
      %v794 = vpack.c.bf16 %v786, %v785
      %v795 = vld [vmem:[#allocation3] sm:$0xff]
      %v796 = vld [vmem:[#allocation3 + $0x8] sm:$0xff]
      %v797 = vld [vmem:[#allocation3 + $0x10] sm:$0xff]
      %v798 = vld [vmem:[#allocation3 + $0x18] sm:$0xff]
      %v799 = vld [vmem:[#allocation3 + $0x20] sm:$0xff]
      %v800 = vld [vmem:[#allocation3 + $0x28] sm:$0xff]
      %v801 = vld [vmem:[#allocation3 + $0x30] sm:$0xff]
      %v802 = vld [vmem:[#allocation3 + $0x38] sm:$0xff]
      %803 = vmatprep.subr.bf16.mxu0 0
      %804 = vmatpush1.bf16.msra.mxu0 %v787
      %805 = vmatprep.subr.bf16.mxu0 0
      %806 = vmatpush1.bf16.msra.mxu0 %v788
      %807 = vmatprep.subr.bf16.mxu0 0
      %808 = vmatpush1.bf16.msra.mxu0 %v789
      %809 = vmatprep.subr.bf16.mxu0 0
      %810 = vmatpush1.bf16.msra.mxu0 %v790
      %811 = vmatprep.subr.bf16.mxu0 0
      %812 = vmatpush1.bf16.msra.mxu0 %v791
      %813 = vmatprep.subr.bf16.mxu0 0
      %814 = vmatpush1.bf16.msra.mxu0 %v792
      %815 = vmatprep.subr.bf16.mxu0 0
      %816 = vmatpush1.bf16.msra.mxu0 %v793
      %817 = vmatprep.subr.bf16.mxu0 0
      %818 = vmatpush1.bf16.msra.mxu0 %v794
      %819 = vmatprep.subr.bf16.mxu0 0
      %820 = vmatpush1.bf16.msra.mxu0 0
      %821 = vmatprep.subr.bf16.mxu0 0
      %822 = vmatpush1.bf16.msra.mxu0 0
      %823 = vmatprep.subr.bf16.mxu0 0
      %824 = vmatpush1.bf16.msra.mxu0 0
      %825 = vmatprep.subr.bf16.mxu0 0
      %826 = vmatpush1.bf16.msra.mxu0 0
      %827 = vmatprep.subr.bf16.mxu0 0
      %828 = vmatpush1.bf16.msra.mxu0 0
      %829 = vmatprep.subr.bf16.mxu0 0
      %830 = vmatpush1.bf16.msra.mxu0 0
      %831 = vmatprep.subr.bf16.mxu0 0
      %832 = vmatpush1.bf16.msra.mxu0 0
      %833 = vmatprep.subr.bf16.mxu0 0
      %834 = vmatpush1.bf16.msra.mxu0 0
      %835 = vmatprep.mubr.bf16.mxu0 0
      %836 = vmatmul.mubr.bf16.gmra.mrb[0].mxu0 %v795
      %v837 = vpop.f32.mrb[0].mxu0
      %v838 = vadd.f32 0.0, %v837
      %v839 = vpop.f32.mrb[0].mxu0
      %v840 = vpop.f32.mrb[0].mxu0
      %v841 = vadd.f32 0.0, %v840
      %v842 = vpop.f32.mrb[0].mxu0
      %843 = vmatprep.mubr.bf16.mxu0 0
      %844 = vmatmul.mubr.bf16.gmra.mrb[0].mxu0 %v796
      %v845 = vpop.f32.mrb[0].mxu0
      %v846 = vadd.f32 0.0, %v845
      %v847 = vpop.f32.mrb[0].mxu0
      %v848 = vpop.f32.mrb[0].mxu0
      %v849 = vadd.f32 0.0, %v848
      %v850 = vpop.f32.mrb[0].mxu0
      %851 = vmatprep.mubr.bf16.mxu0 0
      %852 = vmatmul.mubr.bf16.gmra.mrb[0].mxu0 %v797
      %v853 = vpop.f32.mrb[0].mxu0
      %v854 = vadd.f32 0.0, %v853
      %v855 = vpop.f32.mrb[0].mxu0
      %v856 = vpop.f32.mrb[0].mxu0
      %v857 = vadd.f32 0.0, %v856
      %v858 = vpop.f32.mrb[0].mxu0
      %859 = vmatprep.mubr.bf16.mxu0 0
      %860 = vmatmul.mubr.bf16.gmra.mrb[0].mxu0 %v798
      %v861 = vpop.f32.mrb[0].mxu0
      %v862 = vadd.f32 0.0, %v861
      %v863 = vpop.f32.mrb[0].mxu0
      %v864 = vpop.f32.mrb[0].mxu0
      %v865 = vadd.f32 0.0, %v864
      %v866 = vpop.f32.mrb[0].mxu0
      %867 = vmatprep.mubr.bf16.mxu0 0
      %868 = vmatmul.mubr.bf16.gmra.mrb[0].mxu0 %v799
      %v869 = vpop.f32.mrb[0].mxu0
      %v870 = vadd.f32 0.0, %v869
      %v871 = vpop.f32.mrb[0].mxu0
      %v872 = vpop.f32.mrb[0].mxu0
      %v873 = vadd.f32 0.0, %v872
      %v874 = vpop.f32.mrb[0].mxu0
      %875 = vmatprep.mubr.bf16.mxu0 0
      %876 = vmatmul.mubr.bf16.gmra.mrb[0].mxu0 %v800
      %v877 = vpop.f32.mrb[0].mxu0
      %v878 = vadd.f32 0.0, %v877
      %v879 = vpop.f32.mrb[0].mxu0
      %v880 = vpop.f32.mrb[0].mxu0
      %v881 = vadd.f32 0.0, %v880
      %v882 = vpop.f32.mrb[0].mxu0
      %883 = vmatprep.mubr.bf16.mxu0 0
      %884 = vmatmul.mubr.bf16.gmra.mrb[0].mxu0 %v801
      %v885 = vpop.f32.mrb[0].mxu0
      %v886 = vadd.f32 0.0, %v885
      %v887 = vpop.f32.mrb[0].mxu0
      %v888 = vpop.f32.mrb[0].mxu0
      %v889 = vadd.f32 0.0, %v888
      %v890 = vpop.f32.mrb[0].mxu0
      %891 = vmatprep.mubr.bf16.mxu0 0
      %892 = vmatmul.mubr.bf16.gmra.mrb[0].mxu0 %v802
      %v893 = vpop.f32.mrb[0].mxu0
      %v894 = vadd.f32 0.0, %v893
      %v895 = vpop.f32.mrb[0].mxu0
      %v896 = vpop.f32.mrb[0].mxu0
      %v897 = vadd.f32 0.0, %v896
      %v898 = vpop.f32.mrb[0].mxu0
      %899 = vdwg.mxu0
      %v900 = vmul.f32 %v707, -2.0
      %v901 = vmul.f32 %v708, -2.0
      %v902 = vmul.f32 %v709, -2.0
      %v903 = vmul.f32 %v710, -2.0
      %v904 = vmul.f32 %v711, -2.0
      %v905 = vmul.f32 %v712, -2.0
      %v906 = vmul.f32 %v713, -2.0
      %v907 = vmul.f32 %v714, -2.0
      %v908 = vmul.f32 %v715, -2.0
      %v909 = vmul.f32 %v716, -2.0
      %v910 = vmul.f32 %v717, -2.0
      %v911 = vmul.f32 %v718, -2.0
      %v912 = vmul.f32 %v719, -2.0
      %v913 = vmul.f32 %v720, -2.0
      %v914 = vmul.f32 %v721, -2.0
      %v915 = vmul.f32 %v722, -2.0
      %v916 = vsel %vm385, 1.0, %v900
      %v917 = vsel %vm385, 1.0, %v901
      %v918 = vsel %vm385, 1.0, %v902
      %v919 = vsel %vm385, 1.0, %v903
      %v920 = vsel %vm385, 1.0, %v904
      %v921 = vsel %vm385, 1.0, %v905
      %v922 = vsel %vm385, 1.0, %v906
      %v923 = vsel %vm385, 1.0, %v907
      %v924 = vsel %vm385, 1.0, %v908
      %v925 = vsel %vm385, 1.0, %v909
      %v926 = vsel %vm385, 1.0, %v910
      %v927 = vsel %vm385, 1.0, %v911
      %v928 = vsel %vm385, 1.0, %v912
      %v929 = vsel %vm385, 1.0, %v913
      %v930 = vsel %vm385, 1.0, %v914
      %v931 = vsel %vm385, 1.0, %v915
      %v932 = vmul.f32 %v838, %v916
      %v933 = vmul.f32 %v841, %v917
      %v934 = vmul.f32 %v846, %v918
      %v935 = vmul.f32 %v849, %v919
      %v936 = vmul.f32 %v854, %v920
      %v937 = vmul.f32 %v857, %v921
      %v938 = vmul.f32 %v862, %v922
      %v939 = vmul.f32 %v865, %v923
      %v940 = vmul.f32 %v870, %v924
      %v941 = vmul.f32 %v873, %v925
      %v942 = vmul.f32 %v878, %v926
      %v943 = vmul.f32 %v881, %v927
      %v944 = vmul.f32 %v886, %v928
      %v945 = vmul.f32 %v889, %v929
      %v946 = vmul.f32 %v894, %v930
      %v947 = vmul.f32 %v897, %v931
      %948 = vadd.xlane.f32.xlu0 %v932
      %v949 = vpop.xlane.xlu0 %948
      %950 = vadd.xlane.f32.xlu0 %v933
      %v951 = vpop.xlane.xlu0 %950
      %952 = vadd.xlane.f32.xlu0 %v934
      %v953 = vpop.xlane.xlu0 %952
      %954 = vadd.xlane.f32.xlu0 %v935
      %v955 = vpop.xlane.xlu0 %954
      %956 = vadd.xlane.f32.xlu0 %v936
      %v957 = vpop.xlane.xlu0 %956
      %958 = vadd.xlane.f32.xlu0 %v937
      %v959 = vpop.xlane.xlu0 %958
      %960 = vadd.xlane.f32.xlu0 %v938
      %v961 = vpop.xlane.xlu0 %960
      %962 = vadd.xlane.f32.xlu0 %v939
      %v963 = vpop.xlane.xlu0 %962
      %964 = vadd.xlane.f32.xlu0 %v940
      %v965 = vpop.xlane.xlu0 %964
      %966 = vadd.xlane.f32.xlu0 %v941
      %v967 = vpop.xlane.xlu0 %966
      %968 = vadd.xlane.f32.xlu0 %v942
      %v969 = vpop.xlane.xlu0 %968
      %970 = vadd.xlane.f32.xlu0 %v943
      %v971 = vpop.xlane.xlu0 %970
      %972 = vadd.xlane.f32.xlu0 %v944
      %v973 = vpop.xlane.xlu0 %972
      %974 = vadd.xlane.f32.xlu0 %v945
      %v975 = vpop.xlane.xlu0 %974
      %976 = vadd.xlane.f32.xlu0 %v946
      %v977 = vpop.xlane.xlu0 %976
      %978 = vadd.xlane.f32.xlu0 %v947
      %v979 = vpop.xlane.xlu0 %978
      %v980 = vmul.f32 %v319, %v740
      %v981 = vmul.f32 %v320, %v742
      %v982 = vmul.f32 %v321, %v744
      %v983 = vmul.f32 %v322, %v746
      %v984 = vmul.f32 %v323, %v748
      %v985 = vmul.f32 %v324, %v750
      %v986 = vmul.f32 %v325, %v752
      %v987 = vmul.f32 %v326, %v754
      %v988 = vmul.f32 %v327, %v756
      %v989 = vmul.f32 %v328, %v758
      %v990 = vmul.f32 %v329, %v760
      %v991 = vmul.f32 %v330, %v762
      %v992 = vmul.f32 %v331, %v764
      %v993 = vmul.f32 %v332, %v766
      %v994 = vmul.f32 %v333, %v768
      %v995 = vmul.f32 %v334, %v770
      %v996 = vadd.f32 %v980, %v949
      %v997 = vadd.f32 %v981, %v951
      %v998 = vadd.f32 %v982, %v953
      %v999 = vadd.f32 %v983, %v955
      %v1000 = vadd.f32 %v984, %v957
      %v1001 = vadd.f32 %v985, %v959
      %v1002 = vadd.f32 %v986, %v961
      %v1003 = vadd.f32 %v987, %v963
      %v1004 = vadd.f32 %v988, %v965
      %v1005 = vadd.f32 %v989, %v967
      %v1006 = vadd.f32 %v990, %v969
      %v1007 = vadd.f32 %v991, %v971
      %v1008 = vadd.f32 %v992, %v973
      %v1009 = vadd.f32 %v993, %v975
      %v1010 = vadd.f32 %v994, %v977
      %v1011 = vadd.f32 %v995, %v979
      %v1012 = vmax.f32 %v996, 0.0
      %v1013 = vmax.f32 %v997, 0.0
      %v1014 = vmax.f32 %v998, 0.0
      %v1015 = vmax.f32 %v999, 0.0
      %v1016 = vmax.f32 %v1000, 0.0
      %v1017 = vmax.f32 %v1001, 0.0
      %v1018 = vmax.f32 %v1002, 0.0
      %v1019 = vmax.f32 %v1003, 0.0
      %v1020 = vmax.f32 %v1004, 0.0
      %v1021 = vmax.f32 %v1005, 0.0
      %v1022 = vmax.f32 %v1006, 0.0
      %v1023 = vmax.f32 %v1007, 0.0
      %v1024 = vmax.f32 %v1008, 0.0
      %v1025 = vmax.f32 %v1009, 0.0
      %v1026 = vmax.f32 %v1010, 0.0
      %v1027 = vmax.f32 %v1011, 0.0
      %v1028 = vmul.f32 %v1012, %v352
      %v1029 = vmul.f32 %v1013, %v354
      %v1030 = vmul.f32 %v1014, %v356
      %v1031 = vmul.f32 %v1015, %v358
      %v1032 = vmul.f32 %v1016, %v360
      %v1033 = vmul.f32 %v1017, %v362
      %v1034 = vmul.f32 %v1018, %v364
      %v1035 = vmul.f32 %v1019, %v366
      %v1036 = vmul.f32 %v1020, %v368
      %v1037 = vmul.f32 %v1021, %v370
      %v1038 = vmul.f32 %v1022, %v372
      %v1039 = vmul.f32 %v1023, %v374
      %v1040 = vmul.f32 %v1024, %v376
      %v1041 = vmul.f32 %v1025, %v378
      %v1042 = vmul.f32 %v1026, %v380
      %v1043 = vmul.f32 %v1027, %v382
      %v1044 = vtanh.pop %v1028
      %v1045 = vtanh.pop %v1029
      %v1046 = vtanh.pop %v1030
      %v1047 = vtanh.pop %v1031
      %v1048 = vtanh.pop %v1032
      %v1049 = vtanh.pop %v1033
      %v1050 = vtanh.pop %v1034
      %v1051 = vtanh.pop %v1035
      %v1052 = vtanh.pop %v1036
      %v1053 = vtanh.pop %v1037
      %v1054 = vtanh.pop %v1038
      %v1055 = vtanh.pop %v1039
      %v1056 = vtanh.pop %v1040
      %v1057 = vtanh.pop %v1041
      %v1058 = vtanh.pop %v1042
      %v1059 = vtanh.pop %v1043
      %v1060 = vsub.f32 1.0, %v1044
      %v1061 = vsub.f32 1.0, %v1045
      %v1062 = vsub.f32 1.0, %v1046
      %v1063 = vsub.f32 1.0, %v1047
      %v1064 = vsub.f32 1.0, %v1048
      %v1065 = vsub.f32 1.0, %v1049
      %v1066 = vsub.f32 1.0, %v1050
      %v1067 = vsub.f32 1.0, %v1051
      %v1068 = vsub.f32 1.0, %v1052
      %v1069 = vsub.f32 1.0, %v1053
      %v1070 = vsub.f32 1.0, %v1054
      %v1071 = vsub.f32 1.0, %v1055
      %v1072 = vsub.f32 1.0, %v1056
      %v1073 = vsub.f32 1.0, %v1057
      %v1074 = vsub.f32 1.0, %v1058
      %v1075 = vsub.f32 1.0, %v1059
      %1077 = vset.pattern.permute.xlu0 0
      %1078 = vperm.xlu0 %1077, %v1060
      %v1079 = vpop.permute.xlu0 %1078
      %1082 = vset.pattern.permute.xlu0 0
      %1083 = vperm.xlu0 %1082, %v1061
      %v1084 = vpop.permute.xlu0 %1083
      %1087 = vset.pattern.permute.xlu0 0
      %1088 = vperm.xlu0 %1087, %v1062
      %v1089 = vpop.permute.xlu0 %1088
      %1092 = vset.pattern.permute.xlu0 0
      %1093 = vperm.xlu0 %1092, %v1063
      %v1094 = vpop.permute.xlu0 %1093
      %1097 = vset.pattern.permute.xlu0 0
      %1098 = vperm.xlu0 %1097, %v1064
      %v1099 = vpop.permute.xlu0 %1098
      %1102 = vset.pattern.permute.xlu0 0
      %1103 = vperm.xlu0 %1102, %v1065
      %v1104 = vpop.permute.xlu0 %1103
      %1107 = vset.pattern.permute.xlu0 0
      %1108 = vperm.xlu0 %1107, %v1066
      %v1109 = vpop.permute.xlu0 %1108
      %1112 = vset.pattern.permute.xlu0 0
      %1113 = vperm.xlu0 %1112, %v1067
      %v1114 = vpop.permute.xlu0 %1113
      %1117 = vset.pattern.permute.xlu0 0
      %1118 = vperm.xlu0 %1117, %v1068
      %v1119 = vpop.permute.xlu0 %1118
      %1122 = vset.pattern.permute.xlu0 0
      %1123 = vperm.xlu0 %1122, %v1069
      %v1124 = vpop.permute.xlu0 %1123
      %1127 = vset.pattern.permute.xlu0 0
      %1128 = vperm.xlu0 %1127, %v1070
      %v1129 = vpop.permute.xlu0 %1128
      %1132 = vset.pattern.permute.xlu0 0
      %1133 = vperm.xlu0 %1132, %v1071
      %v1134 = vpop.permute.xlu0 %1133
      %1137 = vset.pattern.permute.xlu0 0
      %1138 = vperm.xlu0 %1137, %v1072
      %v1139 = vpop.permute.xlu0 %1138
      %1142 = vset.pattern.permute.xlu0 0
      %1143 = vperm.xlu0 %1142, %v1073
      %v1144 = vpop.permute.xlu0 %1143
      %1147 = vset.pattern.permute.xlu0 0
      %1148 = vperm.xlu0 %1147, %v1074
      %v1149 = vpop.permute.xlu0 %1148
      %1152 = vset.pattern.permute.xlu0 0
      %1153 = vperm.xlu0 %1152, %v1075
      %v1154 = vpop.permute.xlu0 %1153
      %v1156 = vmul.f32 %v1079, %v398
      %v1157 = vmul.f32 %v1084, %v399
      %v1158 = vmul.f32 %v1089, %v400
      %v1159 = vmul.f32 %v1094, %v401
      %v1160 = vmul.f32 %v1099, %v402
      %v1161 = vmul.f32 %v1104, %v403
      %v1162 = vmul.f32 %v1109, %v404
      %v1163 = vmul.f32 %v1114, %v405
      %v1164 = vmul.f32 %v1119, %v406
      %v1165 = vmul.f32 %v1124, %v407
      %v1166 = vmul.f32 %v1129, %v408
      %v1167 = vmul.f32 %v1134, %v409
      %v1168 = vmul.f32 %v1139, %v410
      %v1169 = vmul.f32 %v1144, %v411
      %v1170 = vmul.f32 %v1149, %v412
      %v1171 = vmul.f32 %v1154, %v413
      %1173 = vset.pattern.permute.xlu0 0
      %1174 = vperm.xlu0 %1173, %v1044
      %v1175 = vpop.permute.xlu0 %1174
      %1178 = vset.pattern.permute.xlu0 0
      %1179 = vperm.xlu0 %1178, %v1045
      %v1180 = vpop.permute.xlu0 %1179
      %1183 = vset.pattern.permute.xlu0 0
      %1184 = vperm.xlu0 %1183, %v1046
      %v1185 = vpop.permute.xlu0 %1184
      %1188 = vset.pattern.permute.xlu0 0
      %1189 = vperm.xlu0 %1188, %v1047
      %v1190 = vpop.permute.xlu0 %1189
      %1193 = vset.pattern.permute.xlu0 0
      %1194 = vperm.xlu0 %1193, %v1048
      %v1195 = vpop.permute.xlu0 %1194
      %1198 = vset.pattern.permute.xlu0 0
      %1199 = vperm.xlu0 %1198, %v1049
      %v1200 = vpop.permute.xlu0 %1199
      %1203 = vset.pattern.permute.xlu0 0
      %1204 = vperm.xlu0 %1203, %v1050
      %v1205 = vpop.permute.xlu0 %1204
      %1208 = vset.pattern.permute.xlu0 0
      %1209 = vperm.xlu0 %1208, %v1051
      %v1210 = vpop.permute.xlu0 %1209
      %1213 = vset.pattern.permute.xlu0 0
      %1214 = vperm.xlu0 %1213, %v1052
      %v1215 = vpop.permute.xlu0 %1214
      %1218 = vset.pattern.permute.xlu0 0
      %1219 = vperm.xlu0 %1218, %v1053
      %v1220 = vpop.permute.xlu0 %1219
      %1223 = vset.pattern.permute.xlu0 0
      %1224 = vperm.xlu0 %1223, %v1054
      %v1225 = vpop.permute.xlu0 %1224
      %1228 = vset.pattern.permute.xlu0 0
      %1229 = vperm.xlu0 %1228, %v1055
      %v1230 = vpop.permute.xlu0 %1229
      %1233 = vset.pattern.permute.xlu0 0
      %1234 = vperm.xlu0 %1233, %v1056
      %v1235 = vpop.permute.xlu0 %1234
      %1238 = vset.pattern.permute.xlu0 0
      %1239 = vperm.xlu0 %1238, %v1057
      %v1240 = vpop.permute.xlu0 %1239
      %1243 = vset.pattern.permute.xlu0 0
      %1244 = vperm.xlu0 %1243, %v1058
      %v1245 = vpop.permute.xlu0 %1244
      %1248 = vset.pattern.permute.xlu0 0
      %1249 = vperm.xlu0 %1248, %v1059
      %v1250 = vpop.permute.xlu0 %1249
      %v1252 = vmul.f32 %v1175, %v707
      %v1253 = vmul.f32 %v1180, %v708
      %v1254 = vmul.f32 %v1185, %v709
      %v1255 = vmul.f32 %v1190, %v710
      %v1256 = vmul.f32 %v1195, %v711
      %v1257 = vmul.f32 %v1200, %v712
      %v1258 = vmul.f32 %v1205, %v713
      %v1259 = vmul.f32 %v1210, %v714
      %v1260 = vmul.f32 %v1215, %v715
      %v1261 = vmul.f32 %v1220, %v716
      %v1262 = vmul.f32 %v1225, %v717
      %v1263 = vmul.f32 %v1230, %v718
      %v1264 = vmul.f32 %v1235, %v719
      %v1265 = vmul.f32 %v1240, %v720
      %v1266 = vmul.f32 %v1245, %v721
      %v1267 = vmul.f32 %v1250, %v722
      %v1268 = vadd.f32 %v1156, %v1252
      %v1269 = vadd.f32 %v1157, %v1253
      %v1270 = vadd.f32 %v1158, %v1254
      %v1271 = vadd.f32 %v1159, %v1255
      %v1272 = vadd.f32 %v1160, %v1256
      %v1273 = vadd.f32 %v1161, %v1257
      %v1274 = vadd.f32 %v1162, %v1258
      %v1275 = vadd.f32 %v1163, %v1259
      %v1276 = vadd.f32 %v1164, %v1260
      %v1277 = vadd.f32 %v1165, %v1261
      %v1278 = vadd.f32 %v1166, %v1262
      %v1279 = vadd.f32 %v1167, %v1263
      %v1280 = vadd.f32 %v1168, %v1264
      %v1281 = vadd.f32 %v1169, %v1265
      %v1282 = vadd.f32 %v1170, %v1266
      %v1283 = vadd.f32 %v1171, %v1267
    $region54: #{tpu_custom_call.1} parent=1 // loop_footer
      %s397 = sadd.s32 1, %s393
    $region55: #{tpu_custom_call.1} parent=1 // loop_footer_branch
      %392 = sbr.rel target = $region51
    $region56: #{tpu_custom_call.1} parent=1 // loop_exit
      _
    %v1284 = vpack.c.bf16 %v399, %v398
    %v1285 = vpack.c.bf16 %v401, %v400
    %v1286 = vpack.c.bf16 %v403, %v402
    %v1287 = vpack.c.bf16 %v405, %v404
    %v1288 = vpack.c.bf16 %v407, %v406
    %v1289 = vpack.c.bf16 %v409, %v408
    %v1290 = vpack.c.bf16 %v411, %v410
    %v1291 = vpack.c.bf16 %v413, %v412
    %v1292 = vld [vmem:[#allocation10] sm:$0xf]
    %v1293 = vld [vmem:[#allocation10 + $0x4] sm:$0xf]
    %v1294 = vld [vmem:[#allocation10 + $0x8] sm:$0xf]
    %v1295 = vld [vmem:[#allocation10 + $0xc] sm:$0xf]
    %v1296 = vld [vmem:[#allocation10 + $0x10] sm:$0xf]
    %v1297 = vld [vmem:[#allocation10 + $0x14] sm:$0xf]
    %v1298 = vld [vmem:[#allocation10 + $0x18] sm:$0xf]
    %v1299 = vld [vmem:[#allocation10 + $0x1c] sm:$0xf]
    %v1300 = vld [vmem:[#allocation10 + $0x20] sm:$0xf]
    %v1301 = vld [vmem:[#allocation10 + $0x24] sm:$0xf]
    %v1302 = vld [vmem:[#allocation10 + $0x28] sm:$0xf]
    %v1303 = vld [vmem:[#allocation10 + $0x2c] sm:$0xf]
    %v1304 = vld [vmem:[#allocation10 + $0x30] sm:$0xf]
    %v1305 = vld [vmem:[#allocation10 + $0x34] sm:$0xf]
    %v1306 = vld [vmem:[#allocation10 + $0x38] sm:$0xf]
    %v1307 = vld [vmem:[#allocation10 + $0x3c] sm:$0xf]
    %v1308 = vld [vmem:[%s5] sm:$0x1]
    %v1310 = vlaneseq
    %v1311 = vshrl.u32 %v1310, 7
    %v1312 = vsub.s32 0, %v1311
    %v1313 = vrot.slane %v1308, %v1312
    %v1331 = vunpack.c.l.b16 %v1292
    %v1332 = vunpack.c.l.b16 %v1293
    %v1333 = vunpack.c.l.b16 %v1294
    %v1334 = vunpack.c.l.b16 %v1295
    %v1335 = vunpack.c.l.b16 %v1296
    %v1336 = vunpack.c.l.b16 %v1297
    %v1337 = vunpack.c.l.b16 %v1298
    %v1338 = vunpack.c.l.b16 %v1299
    %v1339 = vunpack.c.l.b16 %v1300
    %v1340 = vunpack.c.l.b16 %v1301
    %v1341 = vunpack.c.l.b16 %v1302
    %v1342 = vunpack.c.l.b16 %v1303
    %v1343 = vunpack.c.l.b16 %v1304
    %v1344 = vunpack.c.l.b16 %v1305
    %v1345 = vunpack.c.l.b16 %v1306
    %v1346 = vunpack.c.l.b16 %v1307
    %v1347 = vpack.c.b16 %v1332, %v1331
    %v1348 = vpack.c.b16 %v1334, %v1333
    %v1349 = vpack.c.b16 %v1336, %v1335
    %v1350 = vpack.c.b16 %v1338, %v1337
    %v1351 = vpack.c.b16 %v1340, %v1339
    %v1352 = vpack.c.b16 %v1342, %v1341
    %v1353 = vpack.c.b16 %v1344, %v1343
    %v1354 = vpack.c.b16 %v1346, %v1345
    %1363 = vmatprep.subr.bf16.mxu0 0
    %1364 = vmatpush1.bf16.msra.mxu0 %v1347
    %1365 = vmatprep.subr.bf16.mxu0 0
    %1366 = vmatpush1.bf16.msra.mxu0 %v1348
    %1367 = vmatprep.subr.bf16.mxu0 0
    %1368 = vmatpush1.bf16.msra.mxu0 %v1349
    %1369 = vmatprep.subr.bf16.mxu0 0
    %1370 = vmatpush1.bf16.msra.mxu0 %v1350
    %1371 = vmatprep.subr.bf16.mxu0 0
    %1372 = vmatpush1.bf16.msra.mxu0 %v1351
    %1373 = vmatprep.subr.bf16.mxu0 0
    %1374 = vmatpush1.bf16.msra.mxu0 %v1352
    %1375 = vmatprep.subr.bf16.mxu0 0
    %1376 = vmatpush1.bf16.msra.mxu0 %v1353
    %1377 = vmatprep.subr.bf16.mxu0 0
    %1378 = vmatpush1.bf16.msra.mxu0 %v1354
    %1379 = vmatprep.subr.bf16.mxu0 0
    %1380 = vmatpush1.bf16.msra.mxu0 0
    %1381 = vmatprep.subr.bf16.mxu0 0
    %1382 = vmatpush1.bf16.msra.mxu0 0
    %1383 = vmatprep.subr.bf16.mxu0 0
    %1384 = vmatpush1.bf16.msra.mxu0 0
    %1385 = vmatprep.subr.bf16.mxu0 0
    %1386 = vmatpush1.bf16.msra.mxu0 0
    %1387 = vmatprep.subr.bf16.mxu0 0
    %1388 = vmatpush1.bf16.msra.mxu0 0
    %1389 = vmatprep.subr.bf16.mxu0 0
    %1390 = vmatpush1.bf16.msra.mxu0 0
    %1391 = vmatprep.subr.bf16.mxu0 0
    %1392 = vmatpush1.bf16.msra.mxu0 0
    %1393 = vmatprep.subr.bf16.mxu0 0
    %1394 = vmatpush1.bf16.msra.mxu0 0
    %1395 = vmatprep.mubr.bf16.mxu0 0
    %1396 = vmatmul.mubr.bf16.gmra.mrb[0].mxu0 %v1284
    %v1397 = vpop.f32.mrb[0].mxu0
    %v1398 = vadd.f32 %v1313, %v1397
    %v1399 = vpop.f32.mrb[0].mxu0
    %v1400 = vpop.f32.mrb[0].mxu0
    %v1401 = vadd.f32 %v1313, %v1400
    %v1402 = vpop.f32.mrb[0].mxu0
    %1403 = vmatprep.mubr.bf16.mxu0 0
    %1404 = vmatmul.mubr.bf16.gmra.mrb[0].mxu0 %v1285
    %v1405 = vpop.f32.mrb[0].mxu0
    %v1406 = vadd.f32 %v1313, %v1405
    %v1407 = vpop.f32.mrb[0].mxu0
    %v1408 = vpop.f32.mrb[0].mxu0
    %v1409 = vadd.f32 %v1313, %v1408
    %v1410 = vpop.f32.mrb[0].mxu0
    %1411 = vmatprep.mubr.bf16.mxu0 0
    %1412 = vmatmul.mubr.bf16.gmra.mrb[0].mxu0 %v1286
    %v1413 = vpop.f32.mrb[0].mxu0
    %v1414 = vadd.f32 %v1313, %v1413
    %v1415 = vpop.f32.mrb[0].mxu0
    %v1416 = vpop.f32.mrb[0].mxu0
    %v1417 = vadd.f32 %v1313, %v1416
    %v1418 = vpop.f32.mrb[0].mxu0
    %1419 = vmatprep.mubr.bf16.mxu0 0
    %1420 = vmatmul.mubr.bf16.gmra.mrb[0].mxu0 %v1287
    %v1421 = vpop.f32.mrb[0].mxu0
    %v1422 = vadd.f32 %v1313, %v1421
    %v1423 = vpop.f32.mrb[0].mxu0
    %v1424 = vpop.f32.mrb[0].mxu0
    %v1425 = vadd.f32 %v1313, %v1424
    %v1426 = vpop.f32.mrb[0].mxu0
    %1427 = vmatprep.mubr.bf16.mxu0 0
    %1428 = vmatmul.mubr.bf16.gmra.mrb[0].mxu0 %v1288
    %v1429 = vpop.f32.mrb[0].mxu0
    %v1430 = vadd.f32 %v1313, %v1429
    %v1431 = vpop.f32.mrb[0].mxu0
    %v1432 = vpop.f32.mrb[0].mxu0
    %v1433 = vadd.f32 %v1313, %v1432
    %v1434 = vpop.f32.mrb[0].mxu0
    %1435 = vmatprep.mubr.bf16.mxu0 0
    %1436 = vmatmul.mubr.bf16.gmra.mrb[0].mxu0 %v1289
    %v1437 = vpop.f32.mrb[0].mxu0
    %v1438 = vadd.f32 %v1313, %v1437
    %v1439 = vpop.f32.mrb[0].mxu0
    %v1440 = vpop.f32.mrb[0].mxu0
    %v1441 = vadd.f32 %v1313, %v1440
    %v1442 = vpop.f32.mrb[0].mxu0
    %1443 = vmatprep.mubr.bf16.mxu0 0
    %1444 = vmatmul.mubr.bf16.gmra.mrb[0].mxu0 %v1290
    %v1445 = vpop.f32.mrb[0].mxu0
    %v1446 = vadd.f32 %v1313, %v1445
    %v1447 = vpop.f32.mrb[0].mxu0
    %v1448 = vpop.f32.mrb[0].mxu0
    %v1449 = vadd.f32 %v1313, %v1448
    %v1450 = vpop.f32.mrb[0].mxu0
    %1451 = vmatprep.mubr.bf16.mxu0 0
    %1452 = vmatmul.mubr.bf16.gmra.mrb[0].mxu0 %v1291
    %v1453 = vpop.f32.mrb[0].mxu0
    %v1454 = vadd.f32 %v1313, %v1453
    %v1455 = vpop.f32.mrb[0].mxu0
    %v1456 = vpop.f32.mrb[0].mxu0
    %v1457 = vadd.f32 %v1313, %v1456
    %v1458 = vpop.f32.mrb[0].mxu0
    %1459 = vdwg.mxu0
    %1460 = vst [vmem:[#allocation11] sm:$0xff] %v1398
    %1461 = vst [vmem:[#allocation11 + $0x8] sm:$0xff] %v1401
    %1462 = vst [vmem:[#allocation11 + $0x10] sm:$0xff] %v1406
    %1463 = vst [vmem:[#allocation11 + $0x18] sm:$0xff] %v1409
    %1464 = vst [vmem:[#allocation11 + $0x20] sm:$0xff] %v1414
    %1465 = vst [vmem:[#allocation11 + $0x28] sm:$0xff] %v1417
    %1466 = vst [vmem:[#allocation11 + $0x30] sm:$0xff] %v1422
    %1467 = vst [vmem:[#allocation11 + $0x38] sm:$0xff] %v1425
    %1468 = vst [vmem:[#allocation11 + $0x40] sm:$0xff] %v1430
    %1469 = vst [vmem:[#allocation11 + $0x48] sm:$0xff] %v1433
    %1470 = vst [vmem:[#allocation11 + $0x50] sm:$0xff] %v1438
    %1471 = vst [vmem:[#allocation11 + $0x58] sm:$0xff] %v1441
    %1472 = vst [vmem:[#allocation11 + $0x60] sm:$0xff] %v1446
    %1473 = vst [vmem:[#allocation11 + $0x68] sm:$0xff] %v1449
    %1474 = vst [vmem:[#allocation11 + $0x70] sm:$0xff] %v1454
    %1475 = vst [vmem:[#allocation11 + $0x78] sm:$0xff] %v1457
    // Predicated region
    $region57: #{tpu_custom_call.1} parent=1 // pred_check
      _
    $region58: #{tpu_custom_call.1} parent=1 // pred_check_branch
      %1477 = sbr.rel (0) target = $region60
    $region59: #{tpu_custom_call.1} parent=1 // pred_region
      %s1479 = ssub.s32 2048, 2048
      %1480 = vsyncadd [#allocation7], %s1479
      %s1481 = sshll.u32 [#allocation11], 4
      %s1482 = int_to_ptr.vmem [resolvable:$true] %s1481
      %1487 = dma.vmem_to_hbm [thread:$0]  %s1482, 2048, %s9, [#allocation7], 128, 128, 8
    $region60: #{tpu_custom_call.1} parent=1 // pred_fallthru
      _
    // Predicated region
    $region61: #{tpu_custom_call.1} parent=1 // pred_check
      _
    $region62: #{tpu_custom_call.1} parent=1 // pred_check_branch
      %1489 = sbr.rel (0) target = $region64
    $region63: #{tpu_custom_call.1} parent=1 // pred_region
      %1490 = dma.done [#allocation7], 2048
    $region64: #{tpu_custom_call.1} parent=1 // pred_fallthru
      _
    %1491 = vsyncpa [#allocation6], 1
    %1492 = vsyncpa [#allocation9], 1
    %1493 = vsyncpa [#allocation7], 1
  %1494 = vsyncmov [#allocation4]
  %s1495 = vpop.sfrf %1494
  %p1496 = scmp.eq.s32.totalorder %s1495, 0
  %p1497 = pneg %p1496
  %1499 = shalt.err (%p1497)
  %s1500 = scalar_lea.sflag [#allocation4], 1
  %1501 = vsyncmov %s1500
  %s1502 = vpop.sfrf %1501
  %p1503 = scmp.eq.s32.totalorder %s1502, 0
  %p1504 = pneg %p1503
  %1506 = shalt.err (%p1504)

</llo_original>
